<compile_context>
chip_gen: v6e
topology: v6e:2x2x1
jax: 0.10.0
libtpu: 0.0.40
codegen_flags: <defaults>
</compile_context>

<pallas_src>
import functools

import jax
import jax.numpy as jnp
from jax.experimental import pallas as pl
from jax.experimental.pallas import tpu as pltpu


def _round_up(x, m):
    return (x + m - 1) // m * m


_PACKED_CIN_MAX = 32  # below: one packed MXU contraction; above: 9-tap loop


def _vmem_limit_bytes():
    """Generation-aware scoped-VMEM limit (leave headroom for buffers/scratch)."""
    try:
        cap = int(pltpu.get_tpu_info().vmem_capacity_bytes)
    except Exception:
        cap = 64 * 1024 * 1024  # conservative (v7x physical)
    return max(32 * 1024 * 1024, min((cap * 3) // 4, 112 * 1024 * 1024))


def _pick_cout_tile(cout_p):
    for t in (256, 128):
        if cout_p % t == 0:
            return t
    return cout_p


# ----------------------------- in-kernel conv core ---------------------------
def _tap(x, ky, kx, wpad):
    """Tap (ky, kx) of the 3x3 stencil as a lane roll of the flattened image."""
    p = x.shape[-1]
    shift = (-((ky - 1) * wpad + (kx - 1))) % p     # static python int
    return pltpu.roll(x, shift, axis=1) if shift else x


def _conv3x3(x, w, wpad, mm_dtype):
    """3x3 conv of a zero-padded flattened image.

    x: (Cin, P) f32 activation, pad ring / lane tail already zero.
    w: (Cout_t, 9*Cin) packed  OR  (9, Cout_t, Cin) per-tap.
    Returns (Cout_t, P) f32 (MXU operands cast to mm_dtype, f32 accumulation).
    Wrap-around from the rolls only lands on masked ring/tail outputs, so
    interior outputs are exact.
    """
    if w.ndim == 2:
        # Small Cin: single packed MXU contraction over K = 9*Cin.
        patches = jnp.concatenate(
            [_tap(x, ky, kx, wpad) for ky in range(3) for kx in range(3)], axis=0)
        return jnp.dot(w.astype(mm_dtype), patches.astype(mm_dtype),
                       preferred_element_type=jnp.float32)
    # Large Cin: unrolled 9-tap accumulation -- no (9*Cin, P) patches slab.
    acc = None
    t = 0
    for ky in range(3):
        for kx in range(3):
            part = jnp.dot(w[t].astype(mm_dtype),
                           _tap(x, ky, kx, wpad).astype(mm_dtype),
                           preferred_element_type=jnp.float32)
            acc = part if acc is None else acc + part
            t += 1
    return acc


def _stats(y, mask):
    """Masked per-channel (sum, sum_sq) partials -> (Cout_t, 2)."""
    ym = y * mask
    return jnp.concatenate(
        [jnp.sum(ym, axis=1, keepdims=True),
         jnp.sum(ym * y, axis=1, keepdims=True)], axis=1)


# ----------------------------- Pallas kernels --------------------------------
def _conv_stats_kernel(a_ref, w_ref, mask_ref, y_ref, s_ref, *, wpad, mm_dtype):
    """conv1 + BN1 partial stats for one (image, Cout-tile) grid step."""
    y = _conv3x3(a_ref[0], w_ref[...], wpad, mm_dtype)   # (TCO, P) f32
    y_ref[0] = y
    s_ref[0] = _stats(y, mask_ref[...])


def _bn_relu_conv_stats_kernel(y1_ref, scale_ref, shift_ref, w_ref, mask_ref,
                               y_ref, s_ref, *, wpad, mm_dtype):
    """Fused: BN1 + ReLU1 + re-zero pad ring, then conv2 + BN2 partial stats."""
    z = jnp.maximum(y1_ref[0] * scale_ref[...] + shift_ref[...], 0.0) * mask_ref[...]
    y = _conv3x3(z, w_ref[...], wpad, mm_dtype)
    y_ref[0] = y
    s_ref[0] = _stats(y, mask_ref[...])


def _bn_relu_kernel(y_ref, scale_ref, shift_ref, o_ref):
    """Final BN + ReLU (output is sliced to the interior afterwards)."""
    o_ref[0] = jnp.maximum(y_ref[0] * scale_ref[...] + shift_ref[...], 0.0)


# ------------------------------ XLA glue helpers ------------------------------
def _pack_weights(w_oihw, cin_p, cout_p):
    """OIHW -> (Cout_p, 9*Cin_p) [packed, Cin small] or (9, Cout_p, Cin_p)."""
    cout, cin = w_oihw.shape[:2]
    w = jnp.zeros((cout_p, cin_p, 3, 3), jnp.float32)
    w = w.at[:cout, :cin].set(w_oihw.astype(jnp.float32))
    if cin_p < _PACKED_CIN_MAX:
        # (Cout_p, ky, kx, Cin_p) -> (Cout_p, 9*Cin_p); matches in-kernel tap order.
        return jnp.transpose(w, (0, 2, 3, 1)).reshape(cout_p, 9 * cin_p)
    return jnp.transpose(w, (2, 3, 0, 1)).reshape(9, cout_p, cin_p)


def _bn_fold(stats, gamma, beta, cout_p, cnt, eps):
    """Reduce masked partials over N, fold train-mode BN into scale/shift."""
    cout = gamma.shape[0]
    mean = jnp.sum(stats[..., 0], axis=0) / cnt                       # (Cout_p,)
    var = jnp.maximum(jnp.sum(stats[..., 1], axis=0) / cnt - mean * mean, 0.0)
    g = jnp.zeros((cout_p,), jnp.float32).at[:cout].set(gamma.astype(jnp.float32))
    b = jnp.zeros((cout_p,), jnp.float32).at[:cout].set(beta.astype(jnp.float32))
    scale = g * jax.lax.rsqrt(var + eps)
    shift = b - mean * scale
    return scale.reshape(cout_p, 1), shift.reshape(cout_p, 1)


# --------------------------------- forward -----------------------------------
def double_conv_block(x_nchw, params, eps=1e-5, matmul_dtype=jnp.bfloat16):
    """Pallas DoubleConvBlock.forward: (N, Cin, H, W) -> (N, Cout, H, W)."""
    N, Cin, H, W = x_nchw.shape
    Cout = params["w2"].shape[0]

    wpad = W + 2
    p_real = (H + 2) * wpad
    P = _round_up(p_real, 128)              # lane-dense flattened spatial axis
    Cin_p = _round_up(Cin, 8)               # sublane-aligned channel counts
    Cout_p = _round_up(Cout, 8)
    TCO = _pick_cout_tile(Cout_p)
    n_co = Cout_p // TCO
    cp = pltpu.CompilerParams(dimension_semantics=("parallel", "parallel"),
                              vmem_limit_bytes=_vmem_limit_bytes())

    # NCHW is already channel-major: zero-pad channels + spatial, flatten, lane-pad.
    a = jnp.pad(x_nchw.astype(jnp.float32),
                ((0, 0), (0, Cin_p - Cin), (1, 1), (1, 1)))
    a = jnp.pad(a.reshape(N, Cin_p, p_real), ((0, 0), (0, 0), (0, P - p_real)))

    # Valid-position mask (excludes zero-pad ring and lane tail).
    mask = jnp.pad(jnp.ones((H, W), jnp.float32), ((1, 1), (1, 1)))
    mask = jnp.pad(mask.reshape(1, p_real), ((0, 0), (0, P - p_real)))

    w1 = _pack_weights(params["w1"], Cin_p, Cout_p)
    w2 = _pack_weights(params["w2"], Cout_p, Cout_p)
    w1_spec = (pl.BlockSpec((TCO, 9 * Cin_p), lambda n, c: (c, 0)) if w1.ndim == 2
               else pl.BlockSpec((9, TCO, Cin_p), lambda n, c: (0, c, 0)))
    w2_spec = (pl.BlockSpec((TCO, 9 * Cout_p), lambda n, c: (c, 0)) if w2.ndim == 2
               else pl.BlockSpec((9, TCO, Cout_p), lambda n, c: (0, c, 0)))

    mask_spec = pl.BlockSpec((1, P), lambda n, c: (0, 0))
    y_spec = pl.BlockSpec((1, TCO, P), lambda n, c: (n, c, 0))
    s_spec = pl.BlockSpec((1, TCO, 2), lambda n, c: (n, c, 0))
    cnt = float(N * H * W)

    # ---- Pass A: conv1 + BN1 partial stats ----------------------------------
    y1, st1 = pl.pallas_call(
        functools.partial(_conv_stats_kernel, wpad=wpad, mm_dtype=matmul_dtype),
        grid=(N, n_co),
        in_specs=[pl.BlockSpec((1, Cin_p, P), lambda n, c: (n, 0, 0)),
                  w1_spec, mask_spec],
        out_specs=(y_spec, s_spec),
        out_shape=(jax.ShapeDtypeStruct((N, Cout_p, P), jnp.float32),
                   jax.ShapeDtypeStruct((N, Cout_p, 2), jnp.float32)),
        compiler_params=cp,
    )(a, w1, mask)
    scale1, shift1 = _bn_fold(st1, params["g1"], params["bt1"], Cout_p, cnt, eps)

    # ---- Pass B: fused BN1+ReLU1(+re-mask) -> conv2 + BN2 partial stats ------
    y2, st2 = pl.pallas_call(
        functools.partial(_bn_relu_conv_stats_kernel, wpad=wpad, mm_dtype=matmul_dtype),
        grid=(N, n_co),
        in_specs=[pl.BlockSpec((1, Cout_p, P), lambda n, c: (n, 0, 0)),
                  pl.BlockSpec((Cout_p, 1), lambda n, c: (0, 0)),
                  pl.BlockSpec((Cout_p, 1), lambda n, c: (0, 0)),
                  w2_spec, mask_spec],
        out_specs=(y_spec, s_spec),
        out_shape=(jax.ShapeDtypeStruct((N, Cout_p, P), jnp.float32),
                   jax.ShapeDtypeStruct((N, Cout_p, 2), jnp.float32)),
        compiler_params=cp,
    )(y1, scale1, shift1, w2, mask)
    scale2, shift2 = _bn_fold(st2, params["g2"], params["bt2"], Cout_p, cnt, eps)

    # ---- Pass C: final BN2 + ReLU, in-place on y2 (aliased) -------------------
    out = pl.pallas_call(
        _bn_relu_kernel,
        grid=(N, n_co),
        in_specs=[y_spec,
                  pl.BlockSpec((TCO, 1), lambda n, c: (c, 0)),
                  pl.BlockSpec((TCO, 1), lambda n, c: (c, 0))],
        out_specs=y_spec,
        out_shape=jax.ShapeDtypeStruct((N, Cout_p, P), jnp.float32),
        input_output_aliases={0: 0},
        compiler_params=cp,
    )(y2, scale2, shift2)

    # Strip channel padding, lane tail and the padding ring -> NCHW.
    out = out[:, :Cout, :p_real].reshape(N, Cout, H + 2, W + 2)
    return out[:, :, 1:H + 1, 1:W + 1]


# ----------------------------- pure-JAX reference ----------------------------
def _ref_forward(x_nchw, params, eps=1e-5):
    def conv(x, w, b):
        y = jax.lax.conv_general_dilated(
            x, w, window_strides=(1, 1), padding=((1, 1), (1, 1)),
            dimension_numbers=("NCHW", "OIHW", "NCHW"))
        return y + b[None, :, None, None]

    def bn_relu(x, g, bt):
        mean = jnp.mean(x, axis=(0, 2, 3), keepdims=True)
        var = jnp.mean((x - mean) ** 2, axis=(0, 2, 3), keepdims=True)
        y = (x - mean) * jax.lax.rsqrt(var + eps)
        y = y * g[None, :, None, None] + bt[None, :, None, None]
        return jnp.maximum(y, 0.0)

    x = bn_relu(conv(x_nchw, params["w1"], params["b1"]), params["g1"], params["bt1"])
    x = bn_relu(conv(x, params["w2"], params["b2"]), params["g2"], params["bt2"])
    return x


# ----------------------------------- main -------------------------------------
if __name__ == "__main__":
    key = jax.random.PRNGKey(0)
    N, Cin, H, W = 2, 4, 16, 16
    Cout = 8

    k_x, k_w1, k_b1, k_w2, k_b2 = jax.random.split(key, 5)
    x = jax.random.normal(k_x, (N, Cin, H, W), jnp.float32)

    params = {
        "w1": jax.random.normal(k_w1, (Cout, Cin, 3, 3), jnp.float32) * 0.1,
        "b1": jax.random.normal(k_b1, (Cout,), jnp.float32) * 0.1,
        "g1": jnp.ones((Cout,), jnp.float32),    # BatchNorm weight init
        "bt1": jnp.zeros((Cout,), jnp.float32),  # BatchNorm bias init
        "w2": jax.random.normal(k_w2, (Cout, Cout, 3, 3), jnp.float32) * 0.1,
        "b2": jax.random.normal(k_b2, (Cout,), jnp.float32) * 0.1,
        "g2": jnp.ones((Cout,), jnp.float32),
        "bt2": jnp.zeros((Cout,), jnp.float32),
    }

    ref = _ref_forward(x, params)

    # f32-MXU path: tight validation of kernel logic (im2col/BN/fusion exactness).
    out_f32 = jax.block_until_ready(
        jax.jit(functools.partial(double_conv_block, matmul_dtype=jnp.float32))(x, params))
    assert out_f32.shape == (N, Cout, H, W), out_f32.shape
    assert jnp.allclose(out_f32, ref, atol=1e-4, rtol=1e-4), float(
        jnp.max(jnp.abs(out_f32 - ref)))

    # bf16-MXU path (default / production): bf16-level agreement.
    out_bf16 = jax.block_until_ready(jax.jit(double_conv_block)(x, params))
    assert out_bf16.shape == (N, Cout, H, W), out_bf16.shape
    assert jnp.allclose(out_bf16, ref, atol=1e-1, rtol=1e-1), float(
        jnp.max(jnp.abs(out_bf16 - ref)))

    print("KERNEL_OK")
</pallas_src>

<mosaic_0001>
module attributes {stable_mosaic.version = 11 : i64} {
  func.func @_conv_stats_kernel(%arg0: i32, %arg1: i32, %arg2: memref<1x8x384xf32, #tpu.memory_space<vmem>>, %arg3: memref<8x72xf32, #tpu.memory_space<vmem>>, %arg4: memref<1x384xf32, #tpu.memory_space<vmem>>, %arg5: memref<1x8x384xf32, #tpu.memory_space<vmem>>, %arg6: memref<1x8x2xf32, #tpu.memory_space<vmem>>) attributes {dimension_semantics = [#tpu.dimension_semantics<parallel>, #tpu.dimension_semantics<parallel>], iteration_bounds = array<i64: 2, 1>, scalar_prefetch = 0 : i64, scratch_operands = 0 : i64, tpu.core_type = #tpu.core_type<tc>, window_params = [{transform_indices = @transform_0, window_bounds = array<i64: 1, 8, 384>}, {transform_indices = @transform_1, window_bounds = array<i64: 8, 72>}, {pipeline_mode = #tpu.pipeline_mode<synchronous>, transform_indices = @transform_2, window_bounds = array<i64: 1, 384>}, {transform_indices = @transform_3, window_bounds = array<i64: 1, 8, 384>}, {transform_indices = @transform_4, window_bounds = array<i64: 1, 8, 2>}]} {
    %c0 = arith.constant 0 : index
    %c0_0 = arith.constant 0 : index
    %c0_1 = arith.constant 0 : index
    %0 = vector.load %arg2[%c0, %c0_0, %c0_1] : memref<1x8x384xf32, #tpu.memory_space<vmem>>, vector<1x8x384xf32>
    %1 = vector.shape_cast %0 : vector<1x8x384xf32> to vector<8x384xf32>
    %c0_2 = arith.constant 0 : index
    %c0_3 = arith.constant 0 : index
    %2 = vector.load %arg3[%c0_2, %c0_3] : memref<8x72xf32, #tpu.memory_space<vmem>>, vector<8x72xf32>
    %c19_i32 = arith.constant 19 : i32
    %3 = tpu.dynamic_rotate %1 by %c19_i32 dim 1 : vector<8x384xf32>, i32 -> vector<8x384xf32>
    %c18_i32 = arith.constant 18 : i32
    %4 = tpu.dynamic_rotate %1 by %c18_i32 dim 1 : vector<8x384xf32>, i32 -> vector<8x384xf32>
    %c17_i32 = arith.constant 17 : i32
    %5 = tpu.dynamic_rotate %1 by %c17_i32 dim 1 : vector<8x384xf32>, i32 -> vector<8x384xf32>
    %c1_i32 = arith.constant 1 : i32
    %6 = tpu.dynamic_rotate %1 by %c1_i32 dim 1 : vector<8x384xf32>, i32 -> vector<8x384xf32>
    %c383_i32 = arith.constant 383 : i32
    %7 = tpu.dynamic_rotate %1 by %c383_i32 dim 1 : vector<8x384xf32>, i32 -> vector<8x384xf32>
    %c367_i32 = arith.constant 367 : i32
    %8 = tpu.dynamic_rotate %1 by %c367_i32 dim 1 : vector<8x384xf32>, i32 -> vector<8x384xf32>
    %c366_i32 = arith.constant 366 : i32
    %9 = tpu.dynamic_rotate %1 by %c366_i32 dim 1 : vector<8x384xf32>, i32 -> vector<8x384xf32>
    %c365_i32 = arith.constant 365 : i32
    %10 = tpu.dynamic_rotate %1 by %c365_i32 dim 1 : vector<8x384xf32>, i32 -> vector<8x384xf32>
    %11 = tpu.concatenate %3, %4, %5, %6, %1, %7, %8, %9, %10 in 0 : vector<8x384xf32>, vector<8x384xf32>, vector<8x384xf32>, vector<8x384xf32>, vector<8x384xf32>, vector<8x384xf32>, vector<8x384xf32>, vector<8x384xf32>, vector<8x384xf32> -> vector<72x384xf32>
    %cst = arith.constant dense<0.000000e+00> : vector<8x384xf32>
    %12 = tpu.matmul %2, %11, %cst {dimension_numbers = #tpu.dot_dimension_numbers<[1], [0], [0], [1], [0, 0, 1, 1], [], []>} : vector<8x72xf32>, vector<72x384xf32>, vector<8x384xf32> -> vector<8x384xf32>
    %c0_4 = arith.constant 0 : index
    %c0_5 = arith.constant 0 : index
    %c0_6 = arith.constant 0 : index
    %13 = vector.load %arg5[%c0_4, %c0_5, %c0_6] : memref<1x8x384xf32, #tpu.memory_space<vmem>>, vector<1x8x384xf32>
    %14 = vector.shape_cast %13 : vector<1x8x384xf32> to vector<8x384xf32>
    %15 = vector.shape_cast %12 : vector<8x384xf32> to vector<1x8x384xf32>
    tpu.vector_store %arg5[%c0_4, %c0_5, %c0_6], %15 {strides = array<i32>} : memref<1x8x384xf32, #tpu.memory_space<vmem>>, vector<1x8x384xf32>,
    %c0_7 = arith.constant 0 : index
    %c0_8 = arith.constant 0 : index
    %16 = vector.load %arg4[%c0_7, %c0_8] : memref<1x384xf32, #tpu.memory_space<vmem>>, vector<1x384xf32>
    %17 = vector.broadcast %16 : vector<1x384xf32> to vector<8x384xf32>
    %18 = arith.mulf %12, %17 : vector<8x384xf32>
    %cst_9 = arith.constant dense<0.000000e+00> : vector<8xf32>
    %19 = vector.multi_reduction <add>, %18, %cst_9 [1] : vector<8x384xf32> to vector<8xf32>
    %20 = vector.shape_cast %19 : vector<8xf32> to vector<8x1xf32>
    %21 = arith.mulf %18, %12 : vector<8x384xf32>
    %cst_10 = arith.constant dense<0.000000e+00> : vector<8xf32>
    %22 = vector.multi_reduction <add>, %21, %cst_10 [1] : vector<8x384xf32> to vector<8xf32>
    %23 = vector.shape_cast %22 : vector<8xf32> to vector<8x1xf32>
    %24 = tpu.concatenate %20, %23 in 1 : vector<8x1xf32>, vector<8x1xf32> -> vector<8x2xf32>
    %c0_11 = arith.constant 0 : index
    %c0_12 = arith.constant 0 : index
    %c0_13 = arith.constant 0 : index
    %25 = vector.load %arg6[%c0_11, %c0_12, %c0_13] : memref<1x8x2xf32, #tpu.memory_space<vmem>>, vector<1x8x2xf32>
    %26 = vector.shape_cast %25 : vector<1x8x2xf32> to vector<8x2xf32>
    %27 = vector.shape_cast %24 : vector<8x2xf32> to vector<1x8x2xf32>
    tpu.vector_store %arg6[%c0_11, %c0_12, %c0_13], %27 {strides = array<i32>} : memref<1x8x2xf32, #tpu.memory_space<vmem>>, vector<1x8x2xf32>,
    return
  }
  func.func @transform_0(%arg0: i32, %arg1: i32) -> (i32, i32, i32) {
    %c0_i32 = arith.constant 0 : i32
    %c0_i32_0 = arith.constant 0 : i32
    %c0_i32_1 = arith.constant 0 : i32
    return %arg0, %c0_i32, %c0_i32_0 : i32, i32, i32
  }
  func.func @transform_1(%arg0: i32, %arg1: i32) -> (i32, i32) {
    %c0_i32 = arith.constant 0 : i32
    %c0_i32_0 = arith.constant 0 : i32
    return %arg1, %c0_i32 : i32, i32
  }
  func.func @transform_2(%arg0: i32, %arg1: i32) -> (i32, i32) {
    %c0_i32 = arith.constant 0 : i32
    %c0_i32_0 = arith.constant 0 : i32
    %c0_i32_1 = arith.constant 0 : i32
    return %c0_i32, %c0_i32_0 : i32, i32
  }
  func.func @transform_3(%arg0: i32, %arg1: i32) -> (i32, i32, i32) {
    %c0_i32 = arith.constant 0 : i32
    %c0_i32_0 = arith.constant 0 : i32
    return %arg0, %arg1, %c0_i32 : i32, i32, i32
  }
  func.func @transform_4(%arg0: i32, %arg1: i32) -> (i32, i32, i32) {
    %c0_i32 = arith.constant 0 : i32
    %c0_i32_0 = arith.constant 0 : i32
    return %arg0, %arg1, %c0_i32 : i32, i32, i32
  }
}

module attributes {stable_mosaic.version = 11 : i64} {
  func.func @_bn_relu_kernel(%arg0: i32, %arg1: i32, %arg2: memref<1x8x384xf32, #tpu.memory_space<vmem>>, %arg3: memref<8x1xf32, #tpu.memory_space<vmem>>, %arg4: memref<8x1xf32, #tpu.memory_space<vmem>>, %arg5: memref<1x8x384xf32, #tpu.memory_space<vmem>>) attributes {dimension_semantics = [#tpu.dimension_semantics<parallel>, #tpu.dimension_semantics<parallel>], iteration_bounds = array<i64: 2, 1>, scalar_prefetch = 0 : i64, scratch_operands = 0 : i64, tpu.core_type = #tpu.core_type<tc>, window_params = [{transform_indices = @transform_0, window_bounds = array<i64: 1, 8, 384>}, {transform_indices = @transform_1, window_bounds = array<i64: 8, 1>}, {transform_indices = @transform_2, window_bounds = array<i64: 8, 1>}, {transform_indices = @transform_3, window_bounds = array<i64: 1, 8, 384>}]} {
    %c0 = arith.constant 0 : index
    %c0_0 = arith.constant 0 : index
    %c0_1 = arith.constant 0 : index
    %0 = vector.load %arg2[%c0, %c0_0, %c0_1] : memref<1x8x384xf32, #tpu.memory_space<vmem>>, vector<1x8x384xf32>
    %1 = vector.shape_cast %0 : vector<1x8x384xf32> to vector<8x384xf32>
    %c0_2 = arith.constant 0 : index
    %c0_3 = arith.constant 0 : index
    %2 = vector.load %arg3[%c0_2, %c0_3] : memref<8x1xf32, #tpu.memory_space<vmem>>, vector<8x1xf32>
    %3 = vector.broadcast %2 : vector<8x1xf32> to vector<8x384xf32>
    %4 = arith.mulf %1, %3 : vector<8x384xf32>
    %c0_4 = arith.constant 0 : index
    %c0_5 = arith.constant 0 : index
    %5 = vector.load %arg4[%c0_4, %c0_5] : memref<8x1xf32, #tpu.memory_space<vmem>>, vector<8x1xf32>
    %6 = vector.broadcast %5 : vector<8x1xf32> to vector<8x384xf32>
    %7 = arith.addf %4, %6 : vector<8x384xf32>
    %cst = arith.constant 0.000000e+00 : f32
    %8 = vector.broadcast %cst : f32 to vector<8x384xf32>
    %9 = arith.maximumf %7, %8 : vector<8x384xf32>
    %c0_6 = arith.constant 0 : index
    %c0_7 = arith.constant 0 : index
    %c0_8 = arith.constant 0 : index
    %10 = vector.load %arg5[%c0_6, %c0_7, %c0_8] : memref<1x8x384xf32, #tpu.memory_space<vmem>>, vector<1x8x384xf32>
    %11 = vector.shape_cast %10 : vector<1x8x384xf32> to vector<8x384xf32>
    %12 = vector.shape_cast %9 : vector<8x384xf32> to vector<1x8x384xf32>
    tpu.vector_store %arg5[%c0_6, %c0_7, %c0_8], %12 {strides = array<i32>} : memref<1x8x384xf32, #tpu.memory_space<vmem>>, vector<1x8x384xf32>,
    return
  }
  func.func @transform_0(%arg0: i32, %arg1: i32) -> (i32, i32, i32) {
    %c0_i32 = arith.constant 0 : i32
    %c0_i32_0 = arith.constant 0 : i32
    return %arg0, %arg1, %c0_i32 : i32, i32, i32
  }
  func.func @transform_1(%arg0: i32, %arg1: i32) -> (i32, i32) {
    %c0_i32 = arith.constant 0 : i32
    %c0_i32_0 = arith.constant 0 : i32
    return %arg1, %c0_i32 : i32, i32
  }
  func.func @transform_2(%arg0: i32, %arg1: i32) -> (i32, i32) {
    %c0_i32 = arith.constant 0 : i32
    %c0_i32_0 = arith.constant 0 : i32
    return %arg1, %c0_i32 : i32, i32
  }
  func.func @transform_3(%arg0: i32, %arg1: i32) -> (i32, i32, i32) {
    %c0_i32 = arith.constant 0 : i32
    %c0_i32_0 = arith.constant 0 : i32
    return %arg0, %arg1, %c0_i32 : i32, i32, i32
  }
}

module attributes {stable_mosaic.version = 11 : i64} {
  func.func @_bn_relu_conv_stats_kernel(%arg0: i32, %arg1: i32, %arg2: memref<1x8x384xf32, #tpu.memory_space<vmem>>, %arg3: memref<8x1xf32, #tpu.memory_space<vmem>>, %arg4: memref<8x1xf32, #tpu.memory_space<vmem>>, %arg5: memref<8x72xf32, #tpu.memory_space<vmem>>, %arg6: memref<1x384xf32, #tpu.memory_space<vmem>>, %arg7: memref<1x8x384xf32, #tpu.memory_space<vmem>>, %arg8: memref<1x8x2xf32, #tpu.memory_space<vmem>>) attributes {dimension_semantics = [#tpu.dimension_semantics<parallel>, #tpu.dimension_semantics<parallel>], iteration_bounds = array<i64: 2, 1>, scalar_prefetch = 0 : i64, scratch_operands = 0 : i64, tpu.core_type = #tpu.core_type<tc>, window_params = [{transform_indices = @transform_0, window_bounds = array<i64: 1, 8, 384>}, {pipeline_mode = #tpu.pipeline_mode<synchronous>, transform_indices = @transform_1, window_bounds = array<i64: 8, 1>}, {pipeline_mode = #tpu.pipeline_mode<synchronous>, transform_indices = @transform_2, window_bounds = array<i64: 8, 1>}, {transform_indices = @transform_3, window_bounds = array<i64: 8, 72>}, {pipeline_mode = #tpu.pipeline_mode<synchronous>, transform_indices = @transform_4, window_bounds = array<i64: 1, 384>}, {transform_indices = @transform_5, window_bounds = array<i64: 1, 8, 384>}, {transform_indices = @transform_6, window_bounds = array<i64: 1, 8, 2>}]} {
    %c0 = arith.constant 0 : index
    %c0_0 = arith.constant 0 : index
    %c0_1 = arith.constant 0 : index
    %0 = vector.load %arg2[%c0, %c0_0, %c0_1] : memref<1x8x384xf32, #tpu.memory_space<vmem>>, vector<1x8x384xf32>
    %1 = vector.shape_cast %0 : vector<1x8x384xf32> to vector<8x384xf32>
    %c0_2 = arith.constant 0 : index
    %c0_3 = arith.constant 0 : index
    %2 = vector.load %arg3[%c0_2, %c0_3] : memref<8x1xf32, #tpu.memory_space<vmem>>, vector<8x1xf32>
    %3 = vector.broadcast %2 : vector<8x1xf32> to vector<8x384xf32>
    %4 = arith.mulf %1, %3 : vector<8x384xf32>
    %c0_4 = arith.constant 0 : index
    %c0_5 = arith.constant 0 : index
    %5 = vector.load %arg4[%c0_4, %c0_5] : memref<8x1xf32, #tpu.memory_space<vmem>>, vector<8x1xf32>
    %6 = vector.broadcast %5 : vector<8x1xf32> to vector<8x384xf32>
    %7 = arith.addf %4, %6 : vector<8x384xf32>
    %cst = arith.constant 0.000000e+00 : f32
    %8 = vector.broadcast %cst : f32 to vector<8x384xf32>
    %9 = arith.maximumf %7, %8 : vector<8x384xf32>
    %c0_6 = arith.constant 0 : index
    %c0_7 = arith.constant 0 : index
    %10 = vector.load %arg6[%c0_6, %c0_7] : memref<1x384xf32, #tpu.memory_space<vmem>>, vector<1x384xf32>
    %11 = vector.broadcast %10 : vector<1x384xf32> to vector<8x384xf32>
    %12 = arith.mulf %9, %11 : vector<8x384xf32>
    %c0_8 = arith.constant 0 : index
    %c0_9 = arith.constant 0 : index
    %13 = vector.load %arg5[%c0_8, %c0_9] : memref<8x72xf32, #tpu.memory_space<vmem>>, vector<8x72xf32>
    %c19_i32 = arith.constant 19 : i32
    %14 = tpu.dynamic_rotate %12 by %c19_i32 dim 1 : vector<8x384xf32>, i32 -> vector<8x384xf32>
    %c18_i32 = arith.constant 18 : i32
    %15 = tpu.dynamic_rotate %12 by %c18_i32 dim 1 : vector<8x384xf32>, i32 -> vector<8x384xf32>
    %c17_i32 = arith.constant 17 : i32
    %16 = tpu.dynamic_rotate %12 by %c17_i32 dim 1 : vector<8x384xf32>, i32 -> vector<8x384xf32>
    %c1_i32 = arith.constant 1 : i32
    %17 = tpu.dynamic_rotate %12 by %c1_i32 dim 1 : vector<8x384xf32>, i32 -> vector<8x384xf32>
    %c383_i32 = arith.constant 383 : i32
    %18 = tpu.dynamic_rotate %12 by %c383_i32 dim 1 : vector<8x384xf32>, i32 -> vector<8x384xf32>
    %c367_i32 = arith.constant 367 : i32
    %19 = tpu.dynamic_rotate %12 by %c367_i32 dim 1 : vector<8x384xf32>, i32 -> vector<8x384xf32>
    %c366_i32 = arith.constant 366 : i32
    %20 = tpu.dynamic_rotate %12 by %c366_i32 dim 1 : vector<8x384xf32>, i32 -> vector<8x384xf32>
    %c365_i32 = arith.constant 365 : i32
    %21 = tpu.dynamic_rotate %12 by %c365_i32 dim 1 : vector<8x384xf32>, i32 -> vector<8x384xf32>
    %22 = tpu.concatenate %14, %15, %16, %17, %12, %18, %19, %20, %21 in 0 : vector<8x384xf32>, vector<8x384xf32>, vector<8x384xf32>, vector<8x384xf32>, vector<8x384xf32>, vector<8x384xf32>, vector<8x384xf32>, vector<8x384xf32>, vector<8x384xf32> -> vector<72x384xf32>
    %cst_10 = arith.constant dense<0.000000e+00> : vector<8x384xf32>
    %23 = tpu.matmul %13, %22, %cst_10 {dimension_numbers = #tpu.dot_dimension_numbers<[1], [0], [0], [1], [0, 0, 1, 1], [], []>} : vector<8x72xf32>, vector<72x384xf32>, vector<8x384xf32> -> vector<8x384xf32>
    %c0_11 = arith.constant 0 : index
    %c0_12 = arith.constant 0 : index
    %c0_13 = arith.constant 0 : index
    %24 = vector.load %arg7[%c0_11, %c0_12, %c0_13] : memref<1x8x384xf32, #tpu.memory_space<vmem>>, vector<1x8x384xf32>
    %25 = vector.shape_cast %24 : vector<1x8x384xf32> to vector<8x384xf32>
    %26 = vector.shape_cast %23 : vector<8x384xf32> to vector<1x8x384xf32>
    tpu.vector_store %arg7[%c0_11, %c0_12, %c0_13], %26 {strides = array<i32>} : memref<1x8x384xf32, #tpu.memory_space<vmem>>, vector<1x8x384xf32>,
    %c0_14 = arith.constant 0 : index
    %c0_15 = arith.constant 0 : index
    %27 = vector.load %arg6[%c0_14, %c0_15] : memref<1x384xf32, #tpu.memory_space<vmem>>, vector<1x384xf32>
    %28 = vector.broadcast %27 : vector<1x384xf32> to vector<8x384xf32>
    %29 = arith.mulf %23, %28 : vector<8x384xf32>
    %cst_16 = arith.constant dense<0.000000e+00> : vector<8xf32>
    %30 = vector.multi_reduction <add>, %29, %cst_16 [1] : vector<8x384xf32> to vector<8xf32>
    %31 = vector.shape_cast %30 : vector<8xf32> to vector<8x1xf32>
    %32 = arith.mulf %29, %23 : vector<8x384xf32>
    %cst_17 = arith.constant dense<0.000000e+00> : vector<8xf32>
    %33 = vector.multi_reduction <add>, %32, %cst_17 [1] : vector<8x384xf32> to vector<8xf32>
    %34 = vector.shape_cast %33 : vector<8xf32> to vector<8x1xf32>
    %35 = tpu.concatenate %31, %34 in 1 : vector<8x1xf32>, vector<8x1xf32> -> vector<8x2xf32>
    %c0_18 = arith.constant 0 : index
    %c0_19 = arith.constant 0 : index
    %c0_20 = arith.constant 0 : index
    %36 = vector.load %arg8[%c0_18, %c0_19, %c0_20] : memref<1x8x2xf32, #tpu.memory_space<vmem>>, vector<1x8x2xf32>
    %37 = vector.shape_cast %36 : vector<1x8x2xf32> to vector<8x2xf32>
    %38 = vector.shape_cast %35 : vector<8x2xf32> to vector<1x8x2xf32>
    tpu.vector_store %arg8[%c0_18, %c0_19, %c0_20], %38 {strides = array<i32>} : memref<1x8x2xf32, #tpu.memory_space<vmem>>, vector<1x8x2xf32>,
    return
  }
  func.func @transform_0(%arg0: i32, %arg1: i32) -> (i32, i32, i32) {
    %c0_i32 = arith.constant 0 : i32
    %c0_i32_0 = arith.constant 0 : i32
    %c0_i32_1 = arith.constant 0 : i32
    return %arg0, %c0_i32, %c0_i32_0 : i32, i32, i32
  }
  func.func @transform_1(%arg0: i32, %arg1: i32) -> (i32, i32) {
    %c0_i32 = arith.constant 0 : i32
    %c0_i32_0 = arith.constant 0 : i32
    %c0_i32_1 = arith.constant 0 : i32
    return %c0_i32, %c0_i32_0 : i32, i32
  }
  func.func @transform_2(%arg0: i32, %arg1: i32) -> (i32, i32) {
    %c0_i32 = arith.constant 0 : i32
    %c0_i32_0 = arith.constant 0 : i32
    %c0_i32_1 = arith.constant 0 : i32
    return %c0_i32, %c0_i32_0 : i32, i32
  }
  func.func @transform_3(%arg0: i32, %arg1: i32) -> (i32, i32) {
    %c0_i32 = arith.constant 0 : i32
    %c0_i32_0 = arith.constant 0 : i32
    return %arg1, %c0_i32 : i32, i32
  }
  func.func @transform_4(%arg0: i32, %arg1: i32) -> (i32, i32) {
    %c0_i32 = arith.constant 0 : i32
    %c0_i32_0 = arith.constant 0 : i32
    %c0_i32_1 = arith.constant 0 : i32
    return %c0_i32, %c0_i32_0 : i32, i32
  }
  func.func @transform_5(%arg0: i32, %arg1: i32) -> (i32, i32, i32) {
    %c0_i32 = arith.constant 0 : i32
    %c0_i32_0 = arith.constant 0 : i32
    return %arg0, %arg1, %c0_i32 : i32, i32, i32
  }
  func.func @transform_6(%arg0: i32, %arg1: i32) -> (i32, i32, i32) {
    %c0_i32 = arith.constant 0 : i32
    %c0_i32_0 = arith.constant 0 : i32
    return %arg0, %arg1, %c0_i32 : i32, i32, i32
  }
}

</mosaic_0001>

<llo_original>
// kernel: double_conv_block.5
$region0: #{double_conv_block.5}
  #allocation0 [shape = 'u32[]', space=smem, size = 0x4, offset = 0x4, fixed_abs, tag = 'smem constant byte address 0x4 - core index']
  #allocation1 [shape = 'u32[144,128]{1,0:T(1,128)}', space=vmem, size = 0x12000, scoped, tag = 'internal scratch']
  %s0 = inlined_call_operand.vmem [shape: f32[2,8,384], index: 0, kind: input, shape index: {}, may-alias: {0,3}]
  %s1 = inlined_call_operand.vmem [shape: f32[8,1], index: 1, kind: input, shape index: {}]
  %s2 = inlined_call_operand.vmem [shape: f32[8,1], index: 2, kind: input, shape index: {}]
  %s3 = inlined_call_operand.vmem [shape: f32[2,8,384], index: 3, kind: output, shape index: {}, may-alias: {0,3}]
  %s4 = sld [smem:[#allocation0]]
  $region45: #{double_conv_block.5} parent=0
    _
  %s6 = ssub.s32 1, %s4
  %s7 = scalar_select 0, %s6, %s4
  loop: start=0, step=1, limit=4
  $region2: #{double_conv_block.5} parent=0 // loop_pre_header
    _
  $region3: #{double_conv_block.5} parent=0 // loop_header
    %s9 = sphi 0, %s13
    %p10 = scmp.ge.s32.totalorder %s9, 4
    %s16 = sphi 0, %s28
    %s17 = sphi 0, %s24
    %s18 = sphi 0, %s16
    %s19 = sphi 0, %s17
    %s20 = sphi 0, %s18
    %s21 = sphi 0, %s19
    %s33 = sphi 0, %s35
    %s36 = sphi 0, %s33
    %s37 = sphi 0, %s36
    %s53 = sphi 0, %s37
    %s59 = sphi 0, %s61
    %s62 = sphi 0, %s59
    %s63 = sphi 0, %s62
    %s79 = sphi 0, %s63
    %s85 = sphi 0, %s87
    %s88 = sphi 0, %s85
    %s89 = sphi 0, %s88
    %s105 = sphi 0, %s89
    %s113 = sphi 0, %s115
    %s116 = sphi 0, %s113
    %s117 = sphi 0, %s116
    %s133 = sphi 0, %s117
  $region4: #{double_conv_block.5} parent=0 // loop_header_branch
    %12 = sbr.rel (%p10) target = $region8
  $region5: #{double_conv_block.5} parent=0 // loop_body
    %s14 = ssub.s32 %s9, 1
    %s15 = ssub.s32 %s9, 2
    %s22 = sadd.s32 1, %s17
    %p23 = scmp.ge.s32.totalorder %s22, 1
    %s24 = scalar_select %p23, 0, %s22
    %s25 = sadd.s32 1, %s16
    %s26 = scalar_select %p23, %s25, %s16
    %p27 = scmp.ge.s32.totalorder %s26, 2
    %s28 = scalar_select %p27, 0, %s26
    %s29 = ssub.s32 %s16, %s28
    %s30 = ssub.s32 %s17, %s24
    %s31 = sor.u32 %s29, %s30
    %p32 = scmp.eq.s32.totalorder %s31, 0
    %s34 = sadd.s32 %s33, 1
    %s35 = scalar_select %p32, %s33, %s34
    %p38 = pneg %p32
    %p39 = scmp.eq.s32.totalorder %s9, 1
    %p40 = por %p38, %p39
    %p41 = scmp.ne.s32.totalorder %s33, %s36
    %p42 = scmp.eq.s32.totalorder %s9, 0
    %p43 = por %p41, %p42
    %p44 = scmp.ne.s32.totalorder %s33, %s36
    %p45 = scmp.eq.s32.totalorder %s14, 1
    %p46 = por %p44, %p45
    %p47 = scmp.ne.s32.totalorder %s36, %s37
    %p48 = scmp.eq.s32.totalorder %s14, 0
    %p49 = por %p47, %p48
    %p50 = scmp.ne.s32.totalorder %s36, %s37
    %p51 = scmp.eq.s32.totalorder %s15, 1
    %p52 = por %p50, %p51
    %p54 = scmp.ne.s32.totalorder %s37, %s53
    %p55 = scmp.eq.s32.totalorder %s15, 0
    %p56 = por %p54, %p55
    %s57 = ssub.s32 %s17, %s24
    %p58 = scmp.eq.s32.totalorder %s57, 0
    %s60 = sadd.s32 %s59, 1
    %s61 = scalar_select %p58, %s59, %s60
    %p64 = pneg %p58
    %p65 = scmp.eq.s32.totalorder %s9, 1
    %p66 = por %p64, %p65
    %p67 = scmp.ne.s32.totalorder %s59, %s62
    %p68 = scmp.eq.s32.totalorder %s9, 0
    %p69 = por %p67, %p68
    %p70 = scmp.ne.s32.totalorder %s59, %s62
    %p71 = scmp.eq.s32.totalorder %s14, 1
    %p72 = por %p70, %p71
    %p73 = scmp.ne.s32.totalorder %s62, %s63
    %p74 = scmp.eq.s32.totalorder %s14, 0
    %p75 = por %p73, %p74
    %p76 = scmp.ne.s32.totalorder %s62, %s63
    %p77 = scmp.eq.s32.totalorder %s15, 1
    %p78 = por %p76, %p77
    %p80 = scmp.ne.s32.totalorder %s63, %s79
    %p81 = scmp.eq.s32.totalorder %s15, 0
    %p82 = por %p80, %p81
    %s83 = ssub.s32 %s17, %s24
    %p84 = scmp.eq.s32.totalorder %s83, 0
    %s86 = sadd.s32 %s85, 1
    %s87 = scalar_select %p84, %s85, %s86
    %p90 = pneg %p84
    %p91 = scmp.eq.s32.totalorder %s9, 1
    %p92 = por %p90, %p91
    %p93 = scmp.ne.s32.totalorder %s85, %s88
    %p94 = scmp.eq.s32.totalorder %s9, 0
    %p95 = por %p93, %p94
    %p96 = scmp.ne.s32.totalorder %s85, %s88
    %p97 = scmp.eq.s32.totalorder %s14, 1
    %p98 = por %p96, %p97
    %p99 = scmp.ne.s32.totalorder %s88, %s89
    %p100 = scmp.eq.s32.totalorder %s14, 0
    %p101 = por %p99, %p100
    %p102 = scmp.ne.s32.totalorder %s88, %s89
    %p103 = scmp.eq.s32.totalorder %s15, 1
    %p104 = por %p102, %p103
    %p106 = scmp.ne.s32.totalorder %s89, %s105
    %p107 = scmp.eq.s32.totalorder %s15, 0
    %p108 = por %p106, %p107
    %s109 = ssub.s32 %s16, %s28
    %s110 = ssub.s32 %s17, %s24
    %s111 = sor.u32 %s109, %s110
    %p112 = scmp.eq.s32.totalorder %s111, 0
    %s114 = sadd.s32 %s113, 1
    %s115 = scalar_select %p112, %s113, %s114
    %p118 = pneg %p112
    %p119 = scmp.eq.s32.totalorder %s9, 1
    %p120 = por %p118, %p119
    %p121 = scmp.ne.s32.totalorder %s113, %s116
    %p122 = scmp.eq.s32.totalorder %s9, 0
    %p123 = por %p121, %p122
    %p124 = scmp.ne.s32.totalorder %s113, %s116
    %p125 = scmp.eq.s32.totalorder %s14, 1
    %p126 = por %p124, %p125
    %p127 = scmp.ne.s32.totalorder %s116, %s117
    %p128 = scmp.eq.s32.totalorder %s14, 0
    %p129 = por %p127, %p128
    %p130 = scmp.ne.s32.totalorder %s116, %s117
    %p131 = scmp.eq.s32.totalorder %s15, 1
    %p132 = por %p130, %p131
    %p134 = scmp.ne.s32.totalorder %s117, %s133
    %p135 = scmp.eq.s32.totalorder %s15, 0
    %p136 = por %p134, %p135
    %p137 = scmp.le.s32.totalorder 1, %s9
    %p138 = scmp.lt.s32.totalorder %s9, 3
    %p139 = pnand %p137, %p138
    %p140 = pneg %p139
    // Predicated region
    $region9: #{double_conv_block.5} parent=5 // pred_check
      _
    $region10: #{double_conv_block.5} parent=5 // pred_check_branch
      %142 = sbr.rel (%p139) target = $region12
    $region11: #{double_conv_block.5} parent=5 // pred_region
      %s143 = ssub.s32 %s9, 1
      // Predicated region
      $region13: #{double_conv_block.5} parent=11 // pred_check
        %p144 = pneg %p75
      $region14: #{double_conv_block.5} parent=11 // pred_check_branch
        %146 = sbr.rel (%p144) target = $region16
      $region15: #{double_conv_block.5} parent=11 // pred_region
        %p147 = scmp.lt.s32.totalorder %s19, 0
        %s148 = scalar_select %p147, %s19, 0
        %s149 = smul.addr %s148, 8
        %s150 = scalar_lea.vmem %s1, %s149
      $region16: #{double_conv_block.5} parent=11 // pred_fallthru
        _
      // Predicated region
      $region17: #{double_conv_block.5} parent=11 // pred_check
        %p151 = pneg %p101
      $region18: #{double_conv_block.5} parent=11 // pred_check_branch
        %153 = sbr.rel (%p151) target = $region20
      $region19: #{double_conv_block.5} parent=11 // pred_region
        %p154 = scmp.lt.s32.totalorder %s19, 0
        %s155 = scalar_select %p154, %s19, 0
        %s156 = smul.addr %s155, 8
        %s157 = scalar_lea.vmem %s2, %s156
      $region20: #{double_conv_block.5} parent=11 // pred_fallthru
        _
    $region12: #{double_conv_block.5} parent=5 // pred_fallthru
      _
    %p158 = scmp.lt.s32.totalorder %s9, 2
    // Predicated region
    $region21: #{double_conv_block.5} parent=5 // pred_check
      %p159 = pneg %p158
    $region22: #{double_conv_block.5} parent=5 // pred_check_branch
      %161 = sbr.rel (%p159) target = $region24
    $region23: #{double_conv_block.5} parent=5 // pred_region
      // Predicated region
      $region25: #{double_conv_block.5} parent=23 // pred_check
        %p162 = pneg %p43
      $region26: #{double_conv_block.5} parent=23 // pred_check_branch
        %164 = sbr.rel (%p162) target = $region28
      $region27: #{double_conv_block.5} parent=23 // pred_region
        %p165 = scmp.lt.s32.totalorder %s16, 1
        %s166 = scalar_select %p165, %s16, 1
        %p167 = scmp.lt.s32.totalorder %s17, 0
        %s168 = scalar_select %p167, %s17, 0
        %s169 = smul.addr %s168, 3
        %s170 = smul.addr %s166, 3
        %s171 = sadd.s32 %s169, %s170
        %s172 = smul.addr %s171, 8
        %s173 = scalar_lea.vmem %s0, %s172
      $region28: #{double_conv_block.5} parent=23 // pred_fallthru
        _
    $region24: #{double_conv_block.5} parent=5 // pred_fallthru
      _
    %p174 = scmp.le.s32.totalorder 1, %s9
    %p175 = scmp.lt.s32.totalorder %s9, 3
    %p176 = pnand %p174, %p175
    %p177 = pneg %p176
    // Predicated region
    $region29: #{double_conv_block.5} parent=5 // pred_check
      _
    $region30: #{double_conv_block.5} parent=5 // pred_check_branch
      %179 = sbr.rel (%p176) target = $region32
    $region31: #{double_conv_block.5} parent=5 // pred_region
      %s180 = ssub.s32 %s9, 1
      %p181 = scmp.lt.s32.totalorder %s18, 1
      %s182 = scalar_select %p181, %s18, 1
      %p183 = scmp.lt.s32.totalorder %s19, 0
      %s184 = scalar_select %p183, %s19, 0
      %s185 = smul.addr %s184, 3
      %s186 = smul.addr %s182, 3
      %s187 = sadd.s32 %s185, %s186
      %s188 = smul.addr %s187, 8
      %s189 = scalar_lea.vmem %s0, %s188
      %p190 = pneg %p49
      %p191 = pneg %p46
      %p192 = scmp.lt.s32.totalorder %s19, 0
      %s193 = scalar_select %p192, %s19, 0
      %s194 = smul.addr %s193, 8
      %s195 = scalar_lea.vmem %s1, %s194
      %p196 = pneg %p75
      %p197 = pneg %p72
      %p198 = scmp.lt.s32.totalorder %s19, 0
      %s199 = scalar_select %p198, %s19, 0
      %s200 = smul.addr %s199, 8
      %s201 = scalar_lea.vmem %s2, %s200
      %p202 = pneg %p101
      %p203 = pneg %p98
      %p204 = pneg %p129
      %p205 = pneg %p126
      %p206 = scmp.lt.s32.totalorder %s18, 1
      %s207 = scalar_select %p206, %s18, 1
      %p208 = scmp.lt.s32.totalorder %s19, 0
      %s209 = scalar_select %p208, %s19, 0
      %s210 = smul.addr %s209, 3
      %s211 = smul.addr %s207, 3
      %s212 = sadd.s32 %s210, %s211
      %s213 = smul.addr %s212, 8
      %s214 = scalar_lea.vmem %s3, %s213
      %p215 = scmp.lt.s32.totalorder %s18, 1
      %s216 = scalar_select %p215, %s18, 1
      %p217 = scmp.lt.s32.totalorder %s19, 0
      %s218 = scalar_select %p217, %s19, 0
      %s219 = smul.addr %s218, 3
      %s220 = smul.addr %s216, 3
      %s221 = sadd.s32 %s219, %s220
      %s222 = smul.addr %s221, 8
      %s223 = scalar_lea.vmem %s0, %s222
      %p224 = scmp.lt.s32.totalorder %s19, 0
      %s225 = scalar_select %p224, %s19, 0
      %s226 = smul.addr %s225, 8
      %s227 = scalar_lea.vmem %s1, %s226
      %p228 = scmp.lt.s32.totalorder %s19, 0
      %s229 = scalar_select %p228, %s19, 0
      %s230 = smul.addr %s229, 8
      %s231 = scalar_lea.vmem %s2, %s230
      %p232 = scmp.lt.s32.totalorder %s18, 1
      %s233 = scalar_select %p232, %s18, 1
      %p234 = scmp.lt.s32.totalorder %s19, 0
      %s235 = scalar_select %p234, %s19, 0
      %s236 = smul.addr %s235, 3
      %s237 = smul.addr %s233, 3
      %s238 = sadd.s32 %s236, %s237
      %s239 = smul.addr %s238, 8
      %s240 = scalar_lea.vmem %s3, %s239
      %v241 = vld [vmem:[%s223] sm:$0xff]
      %v242 = vld [vmem:[%s223 + $0x8] sm:$0xff]
      %v243 = vld [vmem:[%s223 + $0x10] sm:$0xff]
      %v244 = vld [vmem:[%s227] sm:$0xff]
      %246 = vset.pattern.permute.xlu0 0
      %247 = vperm.xlu0 %246, %v244
      %v248 = vpop.permute.xlu0 %247
      %v250 = vmul.f32 %v241, %v248
      %v251 = vmul.f32 %v242, %v248
      %v252 = vmul.f32 %v243, %v248
      %v253 = vld [vmem:[%s231] sm:$0xff]
      %255 = vset.pattern.permute.xlu0 0
      %256 = vperm.xlu0 %255, %v253
      %v257 = vpop.permute.xlu0 %256
      %v259 = vadd.f32 %v250, %v257
      %v260 = vadd.f32 %v251, %v257
      %v261 = vadd.f32 %v252, %v257
      %v262 = vmax.f32 %v259, 0.0
      %v263 = vmax.f32 %v260, 0.0
      %v264 = vmax.f32 %v261, 0.0
      %265 = vst [vmem:[%s240] sm:$0xff] %v262
      %266 = vst [vmem:[%s240 + $0x8] sm:$0xff] %v263
      %267 = vst [vmem:[%s240 + $0x10] sm:$0xff] %v264
      %p268 = scmp.lt.s32.totalorder %s18, 1
      %s269 = scalar_select %p268, %s18, 1
      %p270 = scmp.lt.s32.totalorder %s19, 0
      %s271 = scalar_select %p270, %s19, 0
      %s272 = smul.addr %s271, 3
      %s273 = smul.addr %s269, 3
      %s274 = sadd.s32 %s272, %s273
      %s275 = smul.addr %s274, 8
      %s276 = scalar_lea.vmem %s3, %s275
      // Predicated region
      $region33: #{double_conv_block.5} parent=31 // pred_check
        %p277 = pneg %p126
      $region34: #{double_conv_block.5} parent=31 // pred_check_branch
        %279 = sbr.rel (%p277) target = $region36
      $region35: #{double_conv_block.5} parent=31 // pred_region
        _
      $region36: #{double_conv_block.5} parent=31 // pred_fallthru
        _
    $region32: #{double_conv_block.5} parent=5 // pred_fallthru
      _
    %p280 = scmp.le.s32.totalorder 2, %s9
    // Predicated region
    $region37: #{double_conv_block.5} parent=5 // pred_check
      %p281 = pneg %p280
    $region38: #{double_conv_block.5} parent=5 // pred_check_branch
      %283 = sbr.rel (%p281) target = $region40
    $region39: #{double_conv_block.5} parent=5 // pred_region
      %s284 = ssub.s32 %s9, 2
      // Predicated region
      $region41: #{double_conv_block.5} parent=39 // pred_check
        %p285 = pneg %p132
      $region42: #{double_conv_block.5} parent=39 // pred_check_branch
        %287 = sbr.rel (%p285) target = $region44
      $region43: #{double_conv_block.5} parent=39 // pred_region
        %p288 = scmp.lt.s32.totalorder %s20, 1
        %s289 = scalar_select %p288, %s20, 1
        %p290 = scmp.lt.s32.totalorder %s21, 0
        %s291 = scalar_select %p290, %s21, 0
        %s292 = smul.addr %s291, 3
        %s293 = smul.addr %s289, 3
        %s294 = sadd.s32 %s292, %s293
        %s295 = smul.addr %s294, 8
        %s296 = scalar_lea.vmem %s3, %s295
      $region44: #{double_conv_block.5} parent=39 // pred_fallthru
        _
    $region40: #{double_conv_block.5} parent=5 // pred_fallthru
      _
  $region6: #{double_conv_block.5} parent=0 // loop_footer
    %s13 = sadd.s32 1, %s9
  $region7: #{double_conv_block.5} parent=0 // loop_footer_branch
    %8 = sbr.rel target = $region3
  $region8: #{double_conv_block.5} parent=0 // loop_exit
    _

// kernel: double_conv_block.4
$region0: #{double_conv_block.4}
  #allocation0 [shape = 'u32[]', space=smem, size = 0x4, offset = 0x4, fixed_abs, tag = 'smem constant byte address 0x4 - core index']
  #allocation1 [shape = 'u32[144,128]{1,0:T(1,128)}', space=vmem, size = 0x12000, scoped, tag = 'internal scratch']
  %s0 = inlined_call_operand.vmem [shape: f32[2,8,384], index: 0, kind: input, shape index: {}]
  %s1 = inlined_call_operand.vmem [shape: f32[8,1], index: 1, kind: input, shape index: {}]
  %s2 = inlined_call_operand.vmem [shape: f32[8,1], index: 2, kind: input, shape index: {}]
  %s3 = inlined_call_operand.vmem [shape: f32[8,72], index: 3, kind: input, shape index: {}]
  %s4 = inlined_call_operand.vmem [shape: f32[1,384], index: 4, kind: input, shape index: {}]
  %s5 = inlined_call_operand.vmem [shape: f32[2,8,384], index: 5, kind: output, shape index: {0}]
  %s6 = inlined_call_operand.vmem [shape: f32[2,8,2], index: 6, kind: output, shape index: {1}]
  %7 = xla_tuple %s5, %s6
  %s8 = sld [smem:[#allocation0]]
  $region61: #{double_conv_block.4} parent=0
    _
  %s10 = ssub.s32 1, %s8
  %s11 = scalar_select 0, %s10, %s8
  loop: start=0, step=1, limit=4
  $region2: #{double_conv_block.4} parent=0 // loop_pre_header
    _
  $region3: #{double_conv_block.4} parent=0 // loop_header
    %s13 = sphi 0, %s17
    %p14 = scmp.ge.s32.totalorder %s13, 4
    %s20 = sphi 0, %s32
    %s21 = sphi 0, %s28
    %s22 = sphi 0, %s20
    %s23 = sphi 0, %s21
    %s24 = sphi 0, %s22
    %s25 = sphi 0, %s23
    %s35 = sphi 0, %s37
    %s38 = sphi 0, %s35
    %s39 = sphi 0, %s38
    %s55 = sphi 0, %s39
    %s59 = sphi 0, %s59
    %s61 = sphi 0, %s59
    %s62 = sphi 0, %s61
    %s76 = sphi 0, %s62
    %s80 = sphi 0, %s80
    %s82 = sphi 0, %s80
    %s83 = sphi 0, %s82
    %s97 = sphi 0, %s83
    %s103 = sphi 0, %s105
    %s106 = sphi 0, %s103
    %s107 = sphi 0, %s106
    %s123 = sphi 0, %s107
    %s127 = sphi 0, %s127
    %s129 = sphi 0, %s127
    %s130 = sphi 0, %s129
    %s144 = sphi 0, %s130
    %s152 = sphi 0, %s154
    %s155 = sphi 0, %s152
    %s156 = sphi 0, %s155
    %s172 = sphi 0, %s156
    %s180 = sphi 0, %s182
    %s183 = sphi 0, %s180
    %s184 = sphi 0, %s183
    %s200 = sphi 0, %s184
  $region4: #{double_conv_block.4} parent=0 // loop_header_branch
    %16 = sbr.rel (%p14) target = $region8
  $region5: #{double_conv_block.4} parent=0 // loop_body
    %s18 = ssub.s32 %s13, 1
    %s19 = ssub.s32 %s13, 2
    %s26 = sadd.s32 1, %s21
    %p27 = scmp.ge.s32.totalorder %s26, 1
    %s28 = scalar_select %p27, 0, %s26
    %s29 = sadd.s32 1, %s20
    %s30 = scalar_select %p27, %s29, %s20
    %p31 = scmp.ge.s32.totalorder %s30, 2
    %s32 = scalar_select %p31, 0, %s30
    %s33 = ssub.s32 %s20, %s32
    %p34 = scmp.eq.s32.totalorder %s33, 0
    %s36 = sadd.s32 %s35, 1
    %s37 = scalar_select %p34, %s35, %s36
    %p40 = pneg %p34
    %p41 = scmp.eq.s32.totalorder %s13, 1
    %p42 = por %p40, %p41
    %p43 = scmp.ne.s32.totalorder %s35, %s38
    %p44 = scmp.eq.s32.totalorder %s13, 0
    %p45 = por %p43, %p44
    %p46 = scmp.ne.s32.totalorder %s35, %s38
    %p47 = scmp.eq.s32.totalorder %s18, 1
    %p48 = por %p46, %p47
    %p49 = scmp.ne.s32.totalorder %s38, %s39
    %p50 = scmp.eq.s32.totalorder %s18, 0
    %p51 = por %p49, %p50
    %p52 = scmp.ne.s32.totalorder %s38, %s39
    %p53 = scmp.eq.s32.totalorder %s19, 1
    %p54 = por %p52, %p53
    %p56 = scmp.ne.s32.totalorder %s39, %s55
    %p57 = scmp.eq.s32.totalorder %s19, 0
    %p58 = por %p56, %p57
    %s60 = sadd.s32 %s59, 1
    %p63 = scmp.eq.s32.totalorder %s13, 1
    %p64 = scmp.ne.s32.totalorder %s59, %s61
    %p65 = scmp.eq.s32.totalorder %s13, 0
    %p66 = por %p64, %p65
    %p67 = scmp.ne.s32.totalorder %s59, %s61
    %p68 = scmp.eq.s32.totalorder %s18, 1
    %p69 = por %p67, %p68
    %p70 = scmp.ne.s32.totalorder %s61, %s62
    %p71 = scmp.eq.s32.totalorder %s18, 0
    %p72 = por %p70, %p71
    %p73 = scmp.ne.s32.totalorder %s61, %s62
    %p74 = scmp.eq.s32.totalorder %s19, 1
    %p75 = por %p73, %p74
    %p77 = scmp.ne.s32.totalorder %s62, %s76
    %p78 = scmp.eq.s32.totalorder %s19, 0
    %p79 = por %p77, %p78
    %s81 = sadd.s32 %s80, 1
    %p84 = scmp.eq.s32.totalorder %s13, 1
    %p85 = scmp.ne.s32.totalorder %s80, %s82
    %p86 = scmp.eq.s32.totalorder %s13, 0
    %p87 = por %p85, %p86
    %p88 = scmp.ne.s32.totalorder %s80, %s82
    %p89 = scmp.eq.s32.totalorder %s18, 1
    %p90 = por %p88, %p89
    %p91 = scmp.ne.s32.totalorder %s82, %s83
    %p92 = scmp.eq.s32.totalorder %s18, 0
    %p93 = por %p91, %p92
    %p94 = scmp.ne.s32.totalorder %s82, %s83
    %p95 = scmp.eq.s32.totalorder %s19, 1
    %p96 = por %p94, %p95
    %p98 = scmp.ne.s32.totalorder %s83, %s97
    %p99 = scmp.eq.s32.totalorder %s19, 0
    %p100 = por %p98, %p99
    %s101 = ssub.s32 %s21, %s28
    %p102 = scmp.eq.s32.totalorder %s101, 0
    %s104 = sadd.s32 %s103, 1
    %s105 = scalar_select %p102, %s103, %s104
    %p108 = pneg %p102
    %p109 = scmp.eq.s32.totalorder %s13, 1
    %p110 = por %p108, %p109
    %p111 = scmp.ne.s32.totalorder %s103, %s106
    %p112 = scmp.eq.s32.totalorder %s13, 0
    %p113 = por %p111, %p112
    %p114 = scmp.ne.s32.totalorder %s103, %s106
    %p115 = scmp.eq.s32.totalorder %s18, 1
    %p116 = por %p114, %p115
    %p117 = scmp.ne.s32.totalorder %s106, %s107
    %p118 = scmp.eq.s32.totalorder %s18, 0
    %p119 = por %p117, %p118
    %p120 = scmp.ne.s32.totalorder %s106, %s107
    %p121 = scmp.eq.s32.totalorder %s19, 1
    %p122 = por %p120, %p121
    %p124 = scmp.ne.s32.totalorder %s107, %s123
    %p125 = scmp.eq.s32.totalorder %s19, 0
    %p126 = por %p124, %p125
    %s128 = sadd.s32 %s127, 1
    %p131 = scmp.eq.s32.totalorder %s13, 1
    %p132 = scmp.ne.s32.totalorder %s127, %s129
    %p133 = scmp.eq.s32.totalorder %s13, 0
    %p134 = por %p132, %p133
    %p135 = scmp.ne.s32.totalorder %s127, %s129
    %p136 = scmp.eq.s32.totalorder %s18, 1
    %p137 = por %p135, %p136
    %p138 = scmp.ne.s32.totalorder %s129, %s130
    %p139 = scmp.eq.s32.totalorder %s18, 0
    %p140 = por %p138, %p139
    %p141 = scmp.ne.s32.totalorder %s129, %s130
    %p142 = scmp.eq.s32.totalorder %s19, 1
    %p143 = por %p141, %p142
    %p145 = scmp.ne.s32.totalorder %s130, %s144
    %p146 = scmp.eq.s32.totalorder %s19, 0
    %p147 = por %p145, %p146
    %s148 = ssub.s32 %s20, %s32
    %s149 = ssub.s32 %s21, %s28
    %s150 = sor.u32 %s148, %s149
    %p151 = scmp.eq.s32.totalorder %s150, 0
    %s153 = sadd.s32 %s152, 1
    %s154 = scalar_select %p151, %s152, %s153
    %p157 = pneg %p151
    %p158 = scmp.eq.s32.totalorder %s13, 1
    %p159 = por %p157, %p158
    %p160 = scmp.ne.s32.totalorder %s152, %s155
    %p161 = scmp.eq.s32.totalorder %s13, 0
    %p162 = por %p160, %p161
    %p163 = scmp.ne.s32.totalorder %s152, %s155
    %p164 = scmp.eq.s32.totalorder %s18, 1
    %p165 = por %p163, %p164
    %p166 = scmp.ne.s32.totalorder %s155, %s156
    %p167 = scmp.eq.s32.totalorder %s18, 0
    %p168 = por %p166, %p167
    %p169 = scmp.ne.s32.totalorder %s155, %s156
    %p170 = scmp.eq.s32.totalorder %s19, 1
    %p171 = por %p169, %p170
    %p173 = scmp.ne.s32.totalorder %s156, %s172
    %p174 = scmp.eq.s32.totalorder %s19, 0
    %p175 = por %p173, %p174
    %s176 = ssub.s32 %s20, %s32
    %s177 = ssub.s32 %s21, %s28
    %s178 = sor.u32 %s176, %s177
    %p179 = scmp.eq.s32.totalorder %s178, 0
    %s181 = sadd.s32 %s180, 1
    %s182 = scalar_select %p179, %s180, %s181
    %p185 = pneg %p179
    %p186 = scmp.eq.s32.totalorder %s13, 1
    %p187 = por %p185, %p186
    %p188 = scmp.ne.s32.totalorder %s180, %s183
    %p189 = scmp.eq.s32.totalorder %s13, 0
    %p190 = por %p188, %p189
    %p191 = scmp.ne.s32.totalorder %s180, %s183
    %p192 = scmp.eq.s32.totalorder %s18, 1
    %p193 = por %p191, %p192
    %p194 = scmp.ne.s32.totalorder %s183, %s184
    %p195 = scmp.eq.s32.totalorder %s18, 0
    %p196 = por %p194, %p195
    %p197 = scmp.ne.s32.totalorder %s183, %s184
    %p198 = scmp.eq.s32.totalorder %s19, 1
    %p199 = por %p197, %p198
    %p201 = scmp.ne.s32.totalorder %s184, %s200
    %p202 = scmp.eq.s32.totalorder %s19, 0
    %p203 = por %p201, %p202
    %p204 = scmp.le.s32.totalorder 1, %s13
    %p205 = scmp.lt.s32.totalorder %s13, 3
    %p206 = pnand %p204, %p205
    %p207 = pneg %p206
    // Predicated region
    $region9: #{double_conv_block.4} parent=5 // pred_check
      _
    $region10: #{double_conv_block.4} parent=5 // pred_check_branch
      %209 = sbr.rel (%p206) target = $region12
    $region11: #{double_conv_block.4} parent=5 // pred_region
      %s210 = ssub.s32 %s13, 1
      // Predicated region
      $region13: #{double_conv_block.4} parent=11 // pred_check
        %p211 = pneg %p72
      $region14: #{double_conv_block.4} parent=11 // pred_check_branch
        %213 = sbr.rel (%p211) target = $region16
      $region15: #{double_conv_block.4} parent=11 // pred_region
        _
      $region16: #{double_conv_block.4} parent=11 // pred_fallthru
        _
      // Predicated region
      $region17: #{double_conv_block.4} parent=11 // pred_check
        %p214 = pneg %p93
      $region18: #{double_conv_block.4} parent=11 // pred_check_branch
        %216 = sbr.rel (%p214) target = $region20
      $region19: #{double_conv_block.4} parent=11 // pred_region
        _
      $region20: #{double_conv_block.4} parent=11 // pred_fallthru
        _
      // Predicated region
      $region21: #{double_conv_block.4} parent=11 // pred_check
        %p217 = pneg %p119
      $region22: #{double_conv_block.4} parent=11 // pred_check_branch
        %219 = sbr.rel (%p217) target = $region24
      $region23: #{double_conv_block.4} parent=11 // pred_region
        %p220 = scmp.lt.s32.totalorder %s23, 0
        %s221 = scalar_select %p220, %s23, 0
        %s222 = smul.addr %s221, 8
        %s223 = scalar_lea.vmem %s3, %s222
      $region24: #{double_conv_block.4} parent=11 // pred_fallthru
        _
      // Predicated region
      $region25: #{double_conv_block.4} parent=11 // pred_check
        %p224 = pneg %p140
      $region26: #{double_conv_block.4} parent=11 // pred_check_branch
        %226 = sbr.rel (%p224) target = $region28
      $region27: #{double_conv_block.4} parent=11 // pred_region
        _
      $region28: #{double_conv_block.4} parent=11 // pred_fallthru
        _
    $region12: #{double_conv_block.4} parent=5 // pred_fallthru
      _
    %p227 = scmp.lt.s32.totalorder %s13, 2
    // Predicated region
    $region29: #{double_conv_block.4} parent=5 // pred_check
      %p228 = pneg %p227
    $region30: #{double_conv_block.4} parent=5 // pred_check_branch
      %230 = sbr.rel (%p228) target = $region32
    $region31: #{double_conv_block.4} parent=5 // pred_region
      // Predicated region
      $region33: #{double_conv_block.4} parent=31 // pred_check
        %p231 = pneg %p45
      $region34: #{double_conv_block.4} parent=31 // pred_check_branch
        %233 = sbr.rel (%p231) target = $region36
      $region35: #{double_conv_block.4} parent=31 // pred_region
        %p234 = scmp.lt.s32.totalorder %s20, 1
        %s235 = scalar_select %p234, %s20, 1
        %s236 = smul.addr %s235, 3
        %s237 = smul.addr %s236, 8
        %s238 = scalar_lea.vmem %s0, %s237
      $region36: #{double_conv_block.4} parent=31 // pred_fallthru
        _
    $region32: #{double_conv_block.4} parent=5 // pred_fallthru
      _
    %p239 = scmp.le.s32.totalorder 1, %s13
    %p240 = scmp.lt.s32.totalorder %s13, 3
    %p241 = pnand %p239, %p240
    %p242 = pneg %p241
    // Predicated region
    $region37: #{double_conv_block.4} parent=5 // pred_check
      _
    $region38: #{double_conv_block.4} parent=5 // pred_check_branch
      %244 = sbr.rel (%p241) target = $region40
    $region39: #{double_conv_block.4} parent=5 // pred_region
      %s245 = ssub.s32 %s13, 1
      %p246 = scmp.lt.s32.totalorder %s22, 1
      %s247 = scalar_select %p246, %s22, 1
      %s248 = smul.addr %s247, 3
      %s249 = smul.addr %s248, 8
      %s250 = scalar_lea.vmem %s0, %s249
      %p251 = pneg %p51
      %p252 = pneg %p48
      %p253 = pneg %p72
      %p254 = pneg %p69
      %p255 = pneg %p93
      %p256 = pneg %p90
      %p257 = scmp.lt.s32.totalorder %s23, 0
      %s258 = scalar_select %p257, %s23, 0
      %s259 = smul.addr %s258, 8
      %s260 = scalar_lea.vmem %s3, %s259
      %p261 = pneg %p119
      %p262 = pneg %p116
      %p263 = pneg %p140
      %p264 = pneg %p137
      %p265 = pneg %p168
      %p266 = pneg %p165
      %p267 = scmp.lt.s32.totalorder %s22, 1
      %s268 = scalar_select %p267, %s22, 1
      %p269 = scmp.lt.s32.totalorder %s23, 0
      %s270 = scalar_select %p269, %s23, 0
      %s271 = smul.addr %s270, 3
      %s272 = smul.addr %s268, 3
      %s273 = sadd.s32 %s271, %s272
      %s274 = smul.addr %s273, 8
      %s275 = scalar_lea.vmem %s5, %s274
      %p276 = pneg %p196
      %p277 = pneg %p193
      %p278 = scmp.lt.s32.totalorder %s22, 1
      %s279 = scalar_select %p278, %s22, 1
      %p280 = scmp.lt.s32.totalorder %s23, 0
      %s281 = scalar_select %p280, %s23, 0
      %s282 = sadd.s32 %s281, %s279
      %s283 = smul.addr %s282, 8
      %s284 = scalar_lea.vmem %s6, %s283
      %p285 = scmp.lt.s32.totalorder %s22, 1
      %s286 = scalar_select %p285, %s22, 1
      %s287 = smul.addr %s286, 3
      %s288 = smul.addr %s287, 8
      %s289 = scalar_lea.vmem %s0, %s288
      %p290 = scmp.lt.s32.totalorder %s23, 0
      %s291 = scalar_select %p290, %s23, 0
      %s292 = smul.addr %s291, 8
      %s293 = scalar_lea.vmem %s3, %s292
      %p294 = scmp.lt.s32.totalorder %s22, 1
      %s295 = scalar_select %p294, %s22, 1
      %p296 = scmp.lt.s32.totalorder %s23, 0
      %s297 = scalar_select %p296, %s23, 0
      %s298 = smul.addr %s297, 3
      %s299 = smul.addr %s295, 3
      %s300 = sadd.s32 %s298, %s299
      %s301 = smul.addr %s300, 8
      %s302 = scalar_lea.vmem %s5, %s301
      %p303 = scmp.lt.s32.totalorder %s22, 1
      %s304 = scalar_select %p303, %s22, 1
      %p305 = scmp.lt.s32.totalorder %s23, 0
      %s306 = scalar_select %p305, %s23, 0
      %s307 = sadd.s32 %s306, %s304
      %s308 = smul.addr %s307, 8
      %s309 = scalar_lea.vmem %s6, %s308
      %v310 = vld [vmem:[%s289] sm:$0xff]
      %v311 = vld [vmem:[%s289 + $0x8] sm:$0xff]
      %v312 = vld [vmem:[%s289 + $0x10] sm:$0xff]
      %v313 = vld [vmem:[%s1] sm:$0xff]
      %315 = vset.pattern.permute.xlu0 0
      %316 = vperm.xlu0 %315, %v313
      %v317 = vpop.permute.xlu0 %316
      %v319 = vmul.f32 %v310, %v317
      %v320 = vmul.f32 %v311, %v317
      %v321 = vmul.f32 %v312, %v317
      %v322 = vld [vmem:[%s2] sm:$0xff]
      %324 = vset.pattern.permute.xlu0 0
      %325 = vperm.xlu0 %324, %v322
      %v326 = vpop.permute.xlu0 %325
      %v328 = vadd.f32 %v319, %v326
      %v329 = vadd.f32 %v320, %v326
      %v330 = vadd.f32 %v321, %v326
      %v331 = vmax.f32 %v328, 0.0
      %v332 = vmax.f32 %v329, 0.0
      %v333 = vmax.f32 %v330, 0.0
      %v334 = vld [vmem:[%s4] sm:$0x7]
      %v336 = vlaneseq
      %v337 = vshrl.u32 %v336, 7
      %v338 = vsub.s32 0, %v337
      %v339 = vrot.slane %v334, %v338
      %v340 = vlaneseq
      %v341 = vshrl.u32 %v340, 7
      %v342 = vsub.s32 1, %v341
      %v343 = vrot.slane %v334, %v342
      %v344 = vlaneseq
      %v345 = vshrl.u32 %v344, 7
      %v346 = vsub.s32 2, %v345
      %v347 = vrot.slane %v334, %v346
      %v351 = vmul.f32 %v331, %v339
      %v352 = vmul.f32 %v332, %v343
      %v353 = vmul.f32 %v333, %v347
      %v354 = vld [vmem:[%s293] sm:$0xff]
      %355 = vrot.lane.b32.xlu0 %v351, 19
      %v356 = vpop.permute.xlu0 %355
      %357 = vrot.lane.b32.xlu0 %v352, 19
      %v358 = vpop.permute.xlu0 %357
      %359 = vrot.lane.b32.xlu0 %v353, 19
      %v360 = vpop.permute.xlu0 %359
      %v361 = vlaneseq
      %v362 = vand.u32 %v361, 127
      %vm363 = vcmp.lt.s32.totalorder %v362, 19
      %v364 = vsel %vm363, %v358, %v360
      %v365 = vsel %vm363, %v356, %v358
      %v366 = vsel %vm363, %v360, %v356
      %367 = vrot.lane.b32.xlu0 %v351, 18
      %v368 = vpop.permute.xlu0 %367
      %369 = vrot.lane.b32.xlu0 %v352, 18
      %v370 = vpop.permute.xlu0 %369
      %371 = vrot.lane.b32.xlu0 %v353, 18
      %v372 = vpop.permute.xlu0 %371
      %vm373 = vcmp.lt.s32.totalorder %v362, 18
      %v374 = vsel %vm373, %v370, %v372
      %v375 = vsel %vm373, %v368, %v370
      %v376 = vsel %vm373, %v372, %v368
      %377 = vrot.lane.b32.xlu0 %v351, 17
      %v378 = vpop.permute.xlu0 %377
      %379 = vrot.lane.b32.xlu0 %v352, 17
      %v380 = vpop.permute.xlu0 %379
      %381 = vrot.lane.b32.xlu0 %v353, 17
      %v382 = vpop.permute.xlu0 %381
      %vm383 = vcmp.lt.s32.totalorder %v362, 17
      %v384 = vsel %vm383, %v380, %v382
      %v385 = vsel %vm383, %v378, %v380
      %v386 = vsel %vm383, %v382, %v378
      %387 = vrot.lane.b32.xlu0 %v351, 1
      %v388 = vpop.permute.xlu0 %387
      %389 = vrot.lane.b32.xlu0 %v352, 1
      %v390 = vpop.permute.xlu0 %389
      %391 = vrot.lane.b32.xlu0 %v353, 1
      %v392 = vpop.permute.xlu0 %391
      %vm393 = vcmp.lt.s32.totalorder %v362, 1
      %v394 = vsel %vm393, %v390, %v392
      %v395 = vsel %vm393, %v388, %v390
      %v396 = vsel %vm393, %v392, %v388
      %397 = vrot.lane.b32.xlu0 %v351, 127
      %v398 = vpop.permute.xlu0 %397
      %399 = vrot.lane.b32.xlu0 %v352, 127
      %v400 = vpop.permute.xlu0 %399
      %401 = vrot.lane.b32.xlu0 %v353, 127
      %v402 = vpop.permute.xlu0 %401
      %vm403 = vcmp.lt.s32.totalorder %v362, 127
      %v404 = vsel %vm403, %v400, %v402
      %v405 = vsel %vm403, %v398, %v400
      %v406 = vsel %vm403, %v402, %v398
      %407 = vrot.lane.b32.xlu0 %v351, 111
      %v408 = vpop.permute.xlu0 %407
      %409 = vrot.lane.b32.xlu0 %v352, 111
      %v410 = vpop.permute.xlu0 %409
      %411 = vrot.lane.b32.xlu0 %v353, 111
      %v412 = vpop.permute.xlu0 %411
      %vm413 = vcmp.lt.s32.totalorder %v362, 111
      %v414 = vsel %vm413, %v410, %v412
      %v415 = vsel %vm413, %v408, %v410
      %v416 = vsel %vm413, %v412, %v408
      %417 = vrot.lane.b32.xlu0 %v351, 110
      %v418 = vpop.permute.xlu0 %417
      %419 = vrot.lane.b32.xlu0 %v352, 110
      %v420 = vpop.permute.xlu0 %419
      %421 = vrot.lane.b32.xlu0 %v353, 110
      %v422 = vpop.permute.xlu0 %421
      %vm423 = vcmp.lt.s32.totalorder %v362, 110
      %v424 = vsel %vm423, %v420, %v422
      %v425 = vsel %vm423, %v418, %v420
      %v426 = vsel %vm423, %v422, %v418
      %427 = vrot.lane.b32.xlu0 %v351, 109
      %v428 = vpop.permute.xlu0 %427
      %429 = vrot.lane.b32.xlu0 %v352, 109
      %v430 = vpop.permute.xlu0 %429
      %431 = vrot.lane.b32.xlu0 %v353, 109
      %v432 = vpop.permute.xlu0 %431
      %vm433 = vcmp.lt.s32.totalorder %v362, 109
      %v434 = vsel %vm433, %v430, %v432
      %v435 = vsel %vm433, %v428, %v430
      %v436 = vsel %vm433, %v432, %v428
      %vm437 = vcmask 588800
      %v439 = vsel %vm437, %v354, 0
      %441 = vmatprep.subr.mxu0 0.0
      %442 = vmatpush1.msra.mxu0 0.0
      %443 = vmatprep.subr.mxu0 0.0
      %444 = vmatpush1.msra.mxu0 0.0
      %445 = vmatprep.subr.mxu0 0.0
      %446 = vmatpush1.msra.mxu0 0.0
      %447 = vmatprep.subr.mxu0 0.0
      %448 = vmatpush1.msra.mxu0 0.0
      %449 = vmatprep.subr.mxu0 0.0
      %450 = vmatpush1.msra.mxu0 0.0
      %451 = vmatprep.subr.mxu0 0.0
      %452 = vmatpush1.msra.mxu0 0.0
      %453 = vmatprep.subr.mxu0 0.0
      %454 = vmatpush1.msra.mxu0 0.0
      %455 = vmatprep.subr.mxu0 %v434
      %456 = vmatpush1.msra.mxu0 %v435
      %457 = vmatprep.subr.mxu0 %v424
      %458 = vmatpush1.msra.mxu0 %v425
      %459 = vmatprep.subr.mxu0 %v414
      %460 = vmatpush1.msra.mxu0 %v415
      %461 = vmatprep.subr.mxu0 %v404
      %462 = vmatpush1.msra.mxu0 %v405
      %463 = vmatprep.subr.mxu0 %v352
      %464 = vmatpush1.msra.mxu0 %v351
      %465 = vmatprep.subr.mxu0 %v395
      %466 = vmatpush1.msra.mxu0 %v396
      %467 = vmatprep.subr.mxu0 %v385
      %468 = vmatpush1.msra.mxu0 %v386
      %469 = vmatprep.subr.mxu0 %v375
      %470 = vmatpush1.msra.mxu0 %v376
      %471 = vmatprep.subr.mxu0 %v365
      %472 = vmatpush1.msra.mxu0 %v366
      %473 = vmatprep.subr.mxu0 0.0
      %474 = vmatpush2.msra.mxu0 0.0
      %475 = vmatprep.subr.mxu0 0.0
      %476 = vmatpush2.msra.mxu0 0.0
      %477 = vmatprep.subr.mxu0 0.0
      %478 = vmatpush2.msra.mxu0 0.0
      %479 = vmatprep.subr.mxu0 0.0
      %480 = vmatpush2.msra.mxu0 0.0
      %481 = vmatprep.subr.mxu0 0.0
      %482 = vmatpush2.msra.mxu0 0.0
      %483 = vmatprep.subr.mxu0 0.0
      %484 = vmatpush2.msra.mxu0 0.0
      %485 = vmatprep.subr.mxu0 0.0
      %486 = vmatpush2.msra.mxu0 0.0
      %487 = vmatprep.subr.mxu0 0.0
      %488 = vmatpush2.msra.mxu0 0.0
      %489 = vmatprep.subr.mxu0 0.0
      %490 = vmatpush2.msra.mxu0 0.0
      %491 = vmatprep.subr.mxu0 0.0
      %492 = vmatpush2.msra.mxu0 0.0
      %493 = vmatprep.subr.mxu0 0.0
      %494 = vmatpush2.msra.mxu0 0.0
      %495 = vmatprep.subr.mxu0 0.0
      %496 = vmatpush2.msra.mxu0 0.0
      %497 = vmatprep.subr.mxu0 0.0
      %498 = vmatpush2.msra.mxu0 0.0
      %499 = vmatprep.subr.mxu0 0.0
      %500 = vmatpush2.msra.mxu0 0.0
      %501 = vmatprep.subr.mxu0 0.0
      %502 = vmatpush2.msra.mxu0 0.0
      %503 = vmatprep.subr.mxu0 0.0
      %504 = vmatpush2.msra.mxu0 0.0
      %505 = vmatprep.mubr.f32.mxu0 0.0
      %506 = vmatmul.mubr.f32.gmra.mxu0 %v439
      %v507 = vpop.f32.mrf.mxu0
      %v508 = vadd.f32 0.0, %v507
      %v509 = vpop.f32.mrf.mxu0
      %v510 = vadd.f32 0.0, %v509
      %511 = vdwg.mxu0
      %512 = vmatprep.subr.mxu0 0.0
      %513 = vmatpush1.msra.mxu0 0.0
      %514 = vmatprep.subr.mxu0 0.0
      %515 = vmatpush1.msra.mxu0 0.0
      %516 = vmatprep.subr.mxu0 0.0
      %517 = vmatpush1.msra.mxu0 0.0
      %518 = vmatprep.subr.mxu0 0.0
      %519 = vmatpush1.msra.mxu0 0.0
      %520 = vmatprep.subr.mxu0 0.0
      %521 = vmatpush1.msra.mxu0 0.0
      %522 = vmatprep.subr.mxu0 0.0
      %523 = vmatpush1.msra.mxu0 0.0
      %524 = vmatprep.subr.mxu0 0.0
      %525 = vmatpush1.msra.mxu0 0.0
      %526 = vmatprep.subr.mxu0 0.0
      %527 = vmatpush1.msra.mxu0 %v436
      %528 = vmatprep.subr.mxu0 0.0
      %529 = vmatpush1.msra.mxu0 %v426
      %530 = vmatprep.subr.mxu0 0.0
      %531 = vmatpush1.msra.mxu0 %v416
      %532 = vmatprep.subr.mxu0 0.0
      %533 = vmatpush1.msra.mxu0 %v406
      %534 = vmatprep.subr.mxu0 0.0
      %535 = vmatpush1.msra.mxu0 %v353
      %536 = vmatprep.subr.mxu0 0.0
      %537 = vmatpush1.msra.mxu0 %v394
      %538 = vmatprep.subr.mxu0 0.0
      %539 = vmatpush1.msra.mxu0 %v384
      %540 = vmatprep.subr.mxu0 0.0
      %541 = vmatpush1.msra.mxu0 %v374
      %542 = vmatprep.subr.mxu0 0.0
      %543 = vmatpush1.msra.mxu0 %v364
      %544 = vmatprep.subr.mxu0 0.0
      %545 = vmatpush2.msra.mxu0 0.0
      %546 = vmatprep.subr.mxu0 0.0
      %547 = vmatpush2.msra.mxu0 0.0
      %548 = vmatprep.subr.mxu0 0.0
      %549 = vmatpush2.msra.mxu0 0.0
      %550 = vmatprep.subr.mxu0 0.0
      %551 = vmatpush2.msra.mxu0 0.0
      %552 = vmatprep.subr.mxu0 0.0
      %553 = vmatpush2.msra.mxu0 0.0
      %554 = vmatprep.subr.mxu0 0.0
      %555 = vmatpush2.msra.mxu0 0.0
      %556 = vmatprep.subr.mxu0 0.0
      %557 = vmatpush2.msra.mxu0 0.0
      %558 = vmatprep.subr.mxu0 0.0
      %559 = vmatpush2.msra.mxu0 0.0
      %560 = vmatprep.subr.mxu0 0.0
      %561 = vmatpush2.msra.mxu0 0.0
      %562 = vmatprep.subr.mxu0 0.0
      %563 = vmatpush2.msra.mxu0 0.0
      %564 = vmatprep.subr.mxu0 0.0
      %565 = vmatpush2.msra.mxu0 0.0
      %566 = vmatprep.subr.mxu0 0.0
      %567 = vmatpush2.msra.mxu0 0.0
      %568 = vmatprep.subr.mxu0 0.0
      %569 = vmatpush2.msra.mxu0 0.0
      %570 = vmatprep.subr.mxu0 0.0
      %571 = vmatpush2.msra.mxu0 0.0
      %572 = vmatprep.subr.mxu0 0.0
      %573 = vmatpush2.msra.mxu0 0.0
      %574 = vmatprep.subr.mxu0 0.0
      %575 = vmatpush2.msra.mxu0 0.0
      %576 = vmatprep.mubr.f32.mxu0 0.0
      %577 = vmatmul.mubr.f32.gmra.mxu0 %v439
      %v578 = vpop.f32.mrf.mxu0
      %v579 = vadd.f32 0.0, %v578
      %v580 = vpop.f32.mrf.mxu0
      %581 = vdwg.mxu0
      %582 = vst [vmem:[%s302] sm:$0xff] %v508
      %583 = vst [vmem:[%s302 + $0x8] sm:$0xff] %v510
      %584 = vst [vmem:[%s302 + $0x10] sm:$0xff] %v579
      %v585 = vld [vmem:[%s4] sm:$0x7]
      %v587 = vlaneseq
      %v588 = vshrl.u32 %v587, 7
      %v589 = vsub.s32 0, %v588
      %v590 = vrot.slane %v585, %v589
      %v591 = vlaneseq
      %v592 = vshrl.u32 %v591, 7
      %v593 = vsub.s32 1, %v592
      %v594 = vrot.slane %v585, %v593
      %v595 = vlaneseq
      %v596 = vshrl.u32 %v595, 7
      %v597 = vsub.s32 2, %v596
      %v598 = vrot.slane %v585, %v597
      %v602 = vmul.f32 %v508, %v590
      %v603 = vmul.f32 %v510, %v594
      %v604 = vmul.f32 %v579, %v598
      %v605 = vadd.f32 %v602, %v603
      %v606 = vadd.f32 %v605, %v604
      %607 = vadd.xlane.f32.xlu0 %v606
      %v608 = vpop.xlane.xlu0 %607
      %v609 = vmul.f32 %v602, %v508
      %v610 = vmul.f32 %v603, %v510
      %v611 = vmul.f32 %v604, %v579
      %v612 = vadd.f32 %v609, %v610
      %v613 = vadd.f32 %v612, %v611
      %614 = vadd.xlane.f32.xlu0 %v613
      %v615 = vpop.xlane.xlu0 %614
      %vm616 = vcmask 7168
      %v617 = vsel %vm616, %v608, %v615
      %vm618 = vcmask 15360
      %619 = vst.msk [vmem:[%s309] sm:$0xff] %vm618, %v617
      %p620 = scmp.lt.s32.totalorder %s22, 1
      %s621 = scalar_select %p620, %s22, 1
      %p622 = scmp.lt.s32.totalorder %s23, 0
      %s623 = scalar_select %p622, %s23, 0
      %s624 = smul.addr %s623, 3
      %s625 = smul.addr %s621, 3
      %s626 = sadd.s32 %s624, %s625
      %s627 = smul.addr %s626, 8
      %s628 = scalar_lea.vmem %s5, %s627
      %p629 = scmp.lt.s32.totalorder %s22, 1
      %s630 = scalar_select %p629, %s22, 1
      %p631 = scmp.lt.s32.totalorder %s23, 0
      %s632 = scalar_select %p631, %s23, 0
      %s633 = sadd.s32 %s632, %s630
      %s634 = smul.addr %s633, 8
      %s635 = scalar_lea.vmem %s6, %s634
      // Predicated region
      $region41: #{double_conv_block.4} parent=39 // pred_check
        %p636 = pneg %p165
      $region42: #{double_conv_block.4} parent=39 // pred_check_branch
        %638 = sbr.rel (%p636) target = $region44
      $region43: #{double_conv_block.4} parent=39 // pred_region
        _
      $region44: #{double_conv_block.4} parent=39 // pred_fallthru
        _
      // Predicated region
      $region45: #{double_conv_block.4} parent=39 // pred_check
        %p639 = pneg %p193
      $region46: #{double_conv_block.4} parent=39 // pred_check_branch
        %641 = sbr.rel (%p639) target = $region48
      $region47: #{double_conv_block.4} parent=39 // pred_region
        _
      $region48: #{double_conv_block.4} parent=39 // pred_fallthru
        _
    $region40: #{double_conv_block.4} parent=5 // pred_fallthru
      _
    %p642 = scmp.le.s32.totalorder 2, %s13
    // Predicated region
    $region49: #{double_conv_block.4} parent=5 // pred_check
      %p643 = pneg %p642
    $region50: #{double_conv_block.4} parent=5 // pred_check_branch
      %645 = sbr.rel (%p643) target = $region52
    $region51: #{double_conv_block.4} parent=5 // pred_region
      %s646 = ssub.s32 %s13, 2
      // Predicated region
      $region53: #{double_conv_block.4} parent=51 // pred_check
        %p647 = pneg %p171
      $region54: #{double_conv_block.4} parent=51 // pred_check_branch
        %649 = sbr.rel (%p647) target = $region56
      $region55: #{double_conv_block.4} parent=51 // pred_region
        %p650 = scmp.lt.s32.totalorder %s24, 1
        %s651 = scalar_select %p650, %s24, 1
        %p652 = scmp.lt.s32.totalorder %s25, 0
        %s653 = scalar_select %p652, %s25, 0
        %s654 = smul.addr %s653, 3
        %s655 = smul.addr %s651, 3
        %s656 = sadd.s32 %s654, %s655
        %s657 = smul.addr %s656, 8
        %s658 = scalar_lea.vmem %s5, %s657
      $region56: #{double_conv_block.4} parent=51 // pred_fallthru
        _
      // Predicated region
      $region57: #{double_conv_block.4} parent=51 // pred_check
        %p659 = pneg %p199
      $region58: #{double_conv_block.4} parent=51 // pred_check_branch
        %661 = sbr.rel (%p659) target = $region60
      $region59: #{double_conv_block.4} parent=51 // pred_region
        %p662 = scmp.lt.s32.totalorder %s24, 1
        %s663 = scalar_select %p662, %s24, 1
        %p664 = scmp.lt.s32.totalorder %s25, 0
        %s665 = scalar_select %p664, %s25, 0
        %s666 = sadd.s32 %s665, %s663
        %s667 = smul.addr %s666, 8
        %s668 = scalar_lea.vmem %s6, %s667
      $region60: #{double_conv_block.4} parent=51 // pred_fallthru
        _
    $region52: #{double_conv_block.4} parent=5 // pred_fallthru
      _
  $region6: #{double_conv_block.4} parent=0 // loop_footer
    %s17 = sadd.s32 1, %s13
  $region7: #{double_conv_block.4} parent=0 // loop_footer_branch
    %12 = sbr.rel target = $region3
  $region8: #{double_conv_block.4} parent=0 // loop_exit
    _

// kernel: double_conv_block.3
$region0: #{double_conv_block.3}
  #allocation0 [shape = 'u32[]', space=smem, size = 0x4, offset = 0x4, fixed_abs, tag = 'smem constant byte address 0x4 - core index']
  #allocation1 [shape = 'u32[144,128]{1,0:T(1,128)}', space=vmem, size = 0x12000, scoped, tag = 'internal scratch']
  %s0 = inlined_call_operand.vmem [shape: f32[2,8,384], index: 0, kind: input, shape index: {}]
  %s1 = inlined_call_operand.vmem [shape: f32[8,72], index: 1, kind: input, shape index: {}]
  %s2 = inlined_call_operand.vmem [shape: f32[1,384], index: 2, kind: input, shape index: {}]
  %s3 = inlined_call_operand.vmem [shape: f32[2,8,384], index: 3, kind: output, shape index: {0}]
  %s4 = inlined_call_operand.vmem [shape: f32[2,8,2], index: 4, kind: output, shape index: {1}]
  %5 = xla_tuple %s3, %s4
  %s6 = sld [smem:[#allocation0]]
  $region53: #{double_conv_block.3} parent=0
    _
  %s8 = ssub.s32 1, %s6
  %s9 = scalar_select 0, %s8, %s6
  loop: start=0, step=1, limit=4
  $region2: #{double_conv_block.3} parent=0 // loop_pre_header
    _
  $region3: #{double_conv_block.3} parent=0 // loop_header
    %s11 = sphi 0, %s15
    %p12 = scmp.ge.s32.totalorder %s11, 4
    %s18 = sphi 0, %s30
    %s19 = sphi 0, %s26
    %s20 = sphi 0, %s18
    %s21 = sphi 0, %s19
    %s22 = sphi 0, %s20
    %s23 = sphi 0, %s21
    %s33 = sphi 0, %s35
    %s36 = sphi 0, %s33
    %s37 = sphi 0, %s36
    %s53 = sphi 0, %s37
    %s59 = sphi 0, %s61
    %s62 = sphi 0, %s59
    %s63 = sphi 0, %s62
    %s79 = sphi 0, %s63
    %s83 = sphi 0, %s83
    %s85 = sphi 0, %s83
    %s86 = sphi 0, %s85
    %s100 = sphi 0, %s86
    %s108 = sphi 0, %s110
    %s111 = sphi 0, %s108
    %s112 = sphi 0, %s111
    %s128 = sphi 0, %s112
    %s136 = sphi 0, %s138
    %s139 = sphi 0, %s136
    %s140 = sphi 0, %s139
    %s156 = sphi 0, %s140
  $region4: #{double_conv_block.3} parent=0 // loop_header_branch
    %14 = sbr.rel (%p12) target = $region8
  $region5: #{double_conv_block.3} parent=0 // loop_body
    %s16 = ssub.s32 %s11, 1
    %s17 = ssub.s32 %s11, 2
    %s24 = sadd.s32 1, %s19
    %p25 = scmp.ge.s32.totalorder %s24, 1
    %s26 = scalar_select %p25, 0, %s24
    %s27 = sadd.s32 1, %s18
    %s28 = scalar_select %p25, %s27, %s18
    %p29 = scmp.ge.s32.totalorder %s28, 2
    %s30 = scalar_select %p29, 0, %s28
    %s31 = ssub.s32 %s18, %s30
    %p32 = scmp.eq.s32.totalorder %s31, 0
    %s34 = sadd.s32 %s33, 1
    %s35 = scalar_select %p32, %s33, %s34
    %p38 = pneg %p32
    %p39 = scmp.eq.s32.totalorder %s11, 1
    %p40 = por %p38, %p39
    %p41 = scmp.ne.s32.totalorder %s33, %s36
    %p42 = scmp.eq.s32.totalorder %s11, 0
    %p43 = por %p41, %p42
    %p44 = scmp.ne.s32.totalorder %s33, %s36
    %p45 = scmp.eq.s32.totalorder %s16, 1
    %p46 = por %p44, %p45
    %p47 = scmp.ne.s32.totalorder %s36, %s37
    %p48 = scmp.eq.s32.totalorder %s16, 0
    %p49 = por %p47, %p48
    %p50 = scmp.ne.s32.totalorder %s36, %s37
    %p51 = scmp.eq.s32.totalorder %s17, 1
    %p52 = por %p50, %p51
    %p54 = scmp.ne.s32.totalorder %s37, %s53
    %p55 = scmp.eq.s32.totalorder %s17, 0
    %p56 = por %p54, %p55
    %s57 = ssub.s32 %s19, %s26
    %p58 = scmp.eq.s32.totalorder %s57, 0
    %s60 = sadd.s32 %s59, 1
    %s61 = scalar_select %p58, %s59, %s60
    %p64 = pneg %p58
    %p65 = scmp.eq.s32.totalorder %s11, 1
    %p66 = por %p64, %p65
    %p67 = scmp.ne.s32.totalorder %s59, %s62
    %p68 = scmp.eq.s32.totalorder %s11, 0
    %p69 = por %p67, %p68
    %p70 = scmp.ne.s32.totalorder %s59, %s62
    %p71 = scmp.eq.s32.totalorder %s16, 1
    %p72 = por %p70, %p71
    %p73 = scmp.ne.s32.totalorder %s62, %s63
    %p74 = scmp.eq.s32.totalorder %s16, 0
    %p75 = por %p73, %p74
    %p76 = scmp.ne.s32.totalorder %s62, %s63
    %p77 = scmp.eq.s32.totalorder %s17, 1
    %p78 = por %p76, %p77
    %p80 = scmp.ne.s32.totalorder %s63, %s79
    %p81 = scmp.eq.s32.totalorder %s17, 0
    %p82 = por %p80, %p81
    %s84 = sadd.s32 %s83, 1
    %p87 = scmp.eq.s32.totalorder %s11, 1
    %p88 = scmp.ne.s32.totalorder %s83, %s85
    %p89 = scmp.eq.s32.totalorder %s11, 0
    %p90 = por %p88, %p89
    %p91 = scmp.ne.s32.totalorder %s83, %s85
    %p92 = scmp.eq.s32.totalorder %s16, 1
    %p93 = por %p91, %p92
    %p94 = scmp.ne.s32.totalorder %s85, %s86
    %p95 = scmp.eq.s32.totalorder %s16, 0
    %p96 = por %p94, %p95
    %p97 = scmp.ne.s32.totalorder %s85, %s86
    %p98 = scmp.eq.s32.totalorder %s17, 1
    %p99 = por %p97, %p98
    %p101 = scmp.ne.s32.totalorder %s86, %s100
    %p102 = scmp.eq.s32.totalorder %s17, 0
    %p103 = por %p101, %p102
    %s104 = ssub.s32 %s18, %s30
    %s105 = ssub.s32 %s19, %s26
    %s106 = sor.u32 %s104, %s105
    %p107 = scmp.eq.s32.totalorder %s106, 0
    %s109 = sadd.s32 %s108, 1
    %s110 = scalar_select %p107, %s108, %s109
    %p113 = pneg %p107
    %p114 = scmp.eq.s32.totalorder %s11, 1
    %p115 = por %p113, %p114
    %p116 = scmp.ne.s32.totalorder %s108, %s111
    %p117 = scmp.eq.s32.totalorder %s11, 0
    %p118 = por %p116, %p117
    %p119 = scmp.ne.s32.totalorder %s108, %s111
    %p120 = scmp.eq.s32.totalorder %s16, 1
    %p121 = por %p119, %p120
    %p122 = scmp.ne.s32.totalorder %s111, %s112
    %p123 = scmp.eq.s32.totalorder %s16, 0
    %p124 = por %p122, %p123
    %p125 = scmp.ne.s32.totalorder %s111, %s112
    %p126 = scmp.eq.s32.totalorder %s17, 1
    %p127 = por %p125, %p126
    %p129 = scmp.ne.s32.totalorder %s112, %s128
    %p130 = scmp.eq.s32.totalorder %s17, 0
    %p131 = por %p129, %p130
    %s132 = ssub.s32 %s18, %s30
    %s133 = ssub.s32 %s19, %s26
    %s134 = sor.u32 %s132, %s133
    %p135 = scmp.eq.s32.totalorder %s134, 0
    %s137 = sadd.s32 %s136, 1
    %s138 = scalar_select %p135, %s136, %s137
    %p141 = pneg %p135
    %p142 = scmp.eq.s32.totalorder %s11, 1
    %p143 = por %p141, %p142
    %p144 = scmp.ne.s32.totalorder %s136, %s139
    %p145 = scmp.eq.s32.totalorder %s11, 0
    %p146 = por %p144, %p145
    %p147 = scmp.ne.s32.totalorder %s136, %s139
    %p148 = scmp.eq.s32.totalorder %s16, 1
    %p149 = por %p147, %p148
    %p150 = scmp.ne.s32.totalorder %s139, %s140
    %p151 = scmp.eq.s32.totalorder %s16, 0
    %p152 = por %p150, %p151
    %p153 = scmp.ne.s32.totalorder %s139, %s140
    %p154 = scmp.eq.s32.totalorder %s17, 1
    %p155 = por %p153, %p154
    %p157 = scmp.ne.s32.totalorder %s140, %s156
    %p158 = scmp.eq.s32.totalorder %s17, 0
    %p159 = por %p157, %p158
    %p160 = scmp.le.s32.totalorder 1, %s11
    %p161 = scmp.lt.s32.totalorder %s11, 3
    %p162 = pnand %p160, %p161
    %p163 = pneg %p162
    // Predicated region
    $region9: #{double_conv_block.3} parent=5 // pred_check
      _
    $region10: #{double_conv_block.3} parent=5 // pred_check_branch
      %165 = sbr.rel (%p162) target = $region12
    $region11: #{double_conv_block.3} parent=5 // pred_region
      %s166 = ssub.s32 %s11, 1
      // Predicated region
      $region13: #{double_conv_block.3} parent=11 // pred_check
        %p167 = pneg %p75
      $region14: #{double_conv_block.3} parent=11 // pred_check_branch
        %169 = sbr.rel (%p167) target = $region16
      $region15: #{double_conv_block.3} parent=11 // pred_region
        %p170 = scmp.lt.s32.totalorder %s21, 0
        %s171 = scalar_select %p170, %s21, 0
        %s172 = smul.addr %s171, 8
        %s173 = scalar_lea.vmem %s1, %s172
      $region16: #{double_conv_block.3} parent=11 // pred_fallthru
        _
      // Predicated region
      $region17: #{double_conv_block.3} parent=11 // pred_check
        %p174 = pneg %p96
      $region18: #{double_conv_block.3} parent=11 // pred_check_branch
        %176 = sbr.rel (%p174) target = $region20
      $region19: #{double_conv_block.3} parent=11 // pred_region
        _
      $region20: #{double_conv_block.3} parent=11 // pred_fallthru
        _
    $region12: #{double_conv_block.3} parent=5 // pred_fallthru
      _
    %p177 = scmp.lt.s32.totalorder %s11, 2
    // Predicated region
    $region21: #{double_conv_block.3} parent=5 // pred_check
      %p178 = pneg %p177
    $region22: #{double_conv_block.3} parent=5 // pred_check_branch
      %180 = sbr.rel (%p178) target = $region24
    $region23: #{double_conv_block.3} parent=5 // pred_region
      // Predicated region
      $region25: #{double_conv_block.3} parent=23 // pred_check
        %p181 = pneg %p43
      $region26: #{double_conv_block.3} parent=23 // pred_check_branch
        %183 = sbr.rel (%p181) target = $region28
      $region27: #{double_conv_block.3} parent=23 // pred_region
        %p184 = scmp.lt.s32.totalorder %s18, 1
        %s185 = scalar_select %p184, %s18, 1
        %s186 = smul.addr %s185, 3
        %s187 = smul.addr %s186, 8
        %s188 = scalar_lea.vmem %s0, %s187
      $region28: #{double_conv_block.3} parent=23 // pred_fallthru
        _
    $region24: #{double_conv_block.3} parent=5 // pred_fallthru
      _
    %p189 = scmp.le.s32.totalorder 1, %s11
    %p190 = scmp.lt.s32.totalorder %s11, 3
    %p191 = pnand %p189, %p190
    %p192 = pneg %p191
    // Predicated region
    $region29: #{double_conv_block.3} parent=5 // pred_check
      _
    $region30: #{double_conv_block.3} parent=5 // pred_check_branch
      %194 = sbr.rel (%p191) target = $region32
    $region31: #{double_conv_block.3} parent=5 // pred_region
      %s195 = ssub.s32 %s11, 1
      %p196 = scmp.lt.s32.totalorder %s20, 1
      %s197 = scalar_select %p196, %s20, 1
      %s198 = smul.addr %s197, 3
      %s199 = smul.addr %s198, 8
      %s200 = scalar_lea.vmem %s0, %s199
      %p201 = pneg %p49
      %p202 = pneg %p46
      %p203 = scmp.lt.s32.totalorder %s21, 0
      %s204 = scalar_select %p203, %s21, 0
      %s205 = smul.addr %s204, 8
      %s206 = scalar_lea.vmem %s1, %s205
      %p207 = pneg %p75
      %p208 = pneg %p72
      %p209 = pneg %p96
      %p210 = pneg %p93
      %p211 = pneg %p124
      %p212 = pneg %p121
      %p213 = scmp.lt.s32.totalorder %s20, 1
      %s214 = scalar_select %p213, %s20, 1
      %p215 = scmp.lt.s32.totalorder %s21, 0
      %s216 = scalar_select %p215, %s21, 0
      %s217 = smul.addr %s216, 3
      %s218 = smul.addr %s214, 3
      %s219 = sadd.s32 %s217, %s218
      %s220 = smul.addr %s219, 8
      %s221 = scalar_lea.vmem %s3, %s220
      %p222 = pneg %p152
      %p223 = pneg %p149
      %p224 = scmp.lt.s32.totalorder %s20, 1
      %s225 = scalar_select %p224, %s20, 1
      %p226 = scmp.lt.s32.totalorder %s21, 0
      %s227 = scalar_select %p226, %s21, 0
      %s228 = sadd.s32 %s227, %s225
      %s229 = smul.addr %s228, 8
      %s230 = scalar_lea.vmem %s4, %s229
      %p231 = scmp.lt.s32.totalorder %s20, 1
      %s232 = scalar_select %p231, %s20, 1
      %s233 = smul.addr %s232, 3
      %s234 = smul.addr %s233, 8
      %s235 = scalar_lea.vmem %s0, %s234
      %p236 = scmp.lt.s32.totalorder %s21, 0
      %s237 = scalar_select %p236, %s21, 0
      %s238 = smul.addr %s237, 8
      %s239 = scalar_lea.vmem %s1, %s238
      %p240 = scmp.lt.s32.totalorder %s20, 1
      %s241 = scalar_select %p240, %s20, 1
      %p242 = scmp.lt.s32.totalorder %s21, 0
      %s243 = scalar_select %p242, %s21, 0
      %s244 = smul.addr %s243, 3
      %s245 = smul.addr %s241, 3
      %s246 = sadd.s32 %s244, %s245
      %s247 = smul.addr %s246, 8
      %s248 = scalar_lea.vmem %s3, %s247
      %p249 = scmp.lt.s32.totalorder %s20, 1
      %s250 = scalar_select %p249, %s20, 1
      %p251 = scmp.lt.s32.totalorder %s21, 0
      %s252 = scalar_select %p251, %s21, 0
      %s253 = sadd.s32 %s252, %s250
      %s254 = smul.addr %s253, 8
      %s255 = scalar_lea.vmem %s4, %s254
      %v256 = vld [vmem:[%s235] sm:$0xff]
      %v257 = vld [vmem:[%s235 + $0x8] sm:$0xff]
      %v258 = vld [vmem:[%s235 + $0x10] sm:$0xff]
      %v259 = vld [vmem:[%s239] sm:$0xff]
      %260 = vrot.lane.b32.xlu0 %v256, 19
      %v261 = vpop.permute.xlu0 %260
      %262 = vrot.lane.b32.xlu0 %v257, 19
      %v263 = vpop.permute.xlu0 %262
      %264 = vrot.lane.b32.xlu0 %v258, 19
      %v265 = vpop.permute.xlu0 %264
      %v266 = vlaneseq
      %v267 = vand.u32 %v266, 127
      %vm268 = vcmp.lt.s32.totalorder %v267, 19
      %v269 = vsel %vm268, %v263, %v265
      %v270 = vsel %vm268, %v261, %v263
      %v271 = vsel %vm268, %v265, %v261
      %272 = vrot.lane.b32.xlu0 %v256, 18
      %v273 = vpop.permute.xlu0 %272
      %274 = vrot.lane.b32.xlu0 %v257, 18
      %v275 = vpop.permute.xlu0 %274
      %276 = vrot.lane.b32.xlu0 %v258, 18
      %v277 = vpop.permute.xlu0 %276
      %vm278 = vcmp.lt.s32.totalorder %v267, 18
      %v279 = vsel %vm278, %v275, %v277
      %v280 = vsel %vm278, %v273, %v275
      %v281 = vsel %vm278, %v277, %v273
      %282 = vrot.lane.b32.xlu0 %v256, 17
      %v283 = vpop.permute.xlu0 %282
      %284 = vrot.lane.b32.xlu0 %v257, 17
      %v285 = vpop.permute.xlu0 %284
      %286 = vrot.lane.b32.xlu0 %v258, 17
      %v287 = vpop.permute.xlu0 %286
      %vm288 = vcmp.lt.s32.totalorder %v267, 17
      %v289 = vsel %vm288, %v285, %v287
      %v290 = vsel %vm288, %v283, %v285
      %v291 = vsel %vm288, %v287, %v283
      %292 = vrot.lane.b32.xlu0 %v256, 1
      %v293 = vpop.permute.xlu0 %292
      %294 = vrot.lane.b32.xlu0 %v257, 1
      %v295 = vpop.permute.xlu0 %294
      %296 = vrot.lane.b32.xlu0 %v258, 1
      %v297 = vpop.permute.xlu0 %296
      %vm298 = vcmp.lt.s32.totalorder %v267, 1
      %v299 = vsel %vm298, %v295, %v297
      %v300 = vsel %vm298, %v293, %v295
      %v301 = vsel %vm298, %v297, %v293
      %302 = vrot.lane.b32.xlu0 %v256, 127
      %v303 = vpop.permute.xlu0 %302
      %304 = vrot.lane.b32.xlu0 %v257, 127
      %v305 = vpop.permute.xlu0 %304
      %306 = vrot.lane.b32.xlu0 %v258, 127
      %v307 = vpop.permute.xlu0 %306
      %vm308 = vcmp.lt.s32.totalorder %v267, 127
      %v309 = vsel %vm308, %v305, %v307
      %v310 = vsel %vm308, %v303, %v305
      %v311 = vsel %vm308, %v307, %v303
      %312 = vrot.lane.b32.xlu0 %v256, 111
      %v313 = vpop.permute.xlu0 %312
      %314 = vrot.lane.b32.xlu0 %v257, 111
      %v315 = vpop.permute.xlu0 %314
      %316 = vrot.lane.b32.xlu0 %v258, 111
      %v317 = vpop.permute.xlu0 %316
      %vm318 = vcmp.lt.s32.totalorder %v267, 111
      %v319 = vsel %vm318, %v315, %v317
      %v320 = vsel %vm318, %v313, %v315
      %v321 = vsel %vm318, %v317, %v313
      %322 = vrot.lane.b32.xlu0 %v256, 110
      %v323 = vpop.permute.xlu0 %322
      %324 = vrot.lane.b32.xlu0 %v257, 110
      %v325 = vpop.permute.xlu0 %324
      %326 = vrot.lane.b32.xlu0 %v258, 110
      %v327 = vpop.permute.xlu0 %326
      %vm328 = vcmp.lt.s32.totalorder %v267, 110
      %v329 = vsel %vm328, %v325, %v327
      %v330 = vsel %vm328, %v323, %v325
      %v331 = vsel %vm328, %v327, %v323
      %332 = vrot.lane.b32.xlu0 %v256, 109
      %v333 = vpop.permute.xlu0 %332
      %334 = vrot.lane.b32.xlu0 %v257, 109
      %v335 = vpop.permute.xlu0 %334
      %336 = vrot.lane.b32.xlu0 %v258, 109
      %v337 = vpop.permute.xlu0 %336
      %vm338 = vcmp.lt.s32.totalorder %v267, 109
      %v339 = vsel %vm338, %v335, %v337
      %v340 = vsel %vm338, %v333, %v335
      %v341 = vsel %vm338, %v337, %v333
      %vm342 = vcmask 588800
      %v344 = vsel %vm342, %v259, 0
      %346 = vmatprep.subr.mxu0 0.0
      %347 = vmatpush1.msra.mxu0 0.0
      %348 = vmatprep.subr.mxu0 0.0
      %349 = vmatpush1.msra.mxu0 0.0
      %350 = vmatprep.subr.mxu0 0.0
      %351 = vmatpush1.msra.mxu0 0.0
      %352 = vmatprep.subr.mxu0 0.0
      %353 = vmatpush1.msra.mxu0 0.0
      %354 = vmatprep.subr.mxu0 0.0
      %355 = vmatpush1.msra.mxu0 0.0
      %356 = vmatprep.subr.mxu0 0.0
      %357 = vmatpush1.msra.mxu0 0.0
      %358 = vmatprep.subr.mxu0 0.0
      %359 = vmatpush1.msra.mxu0 0.0
      %360 = vmatprep.subr.mxu0 %v339
      %361 = vmatpush1.msra.mxu0 %v340
      %362 = vmatprep.subr.mxu0 %v329
      %363 = vmatpush1.msra.mxu0 %v330
      %364 = vmatprep.subr.mxu0 %v319
      %365 = vmatpush1.msra.mxu0 %v320
      %366 = vmatprep.subr.mxu0 %v309
      %367 = vmatpush1.msra.mxu0 %v310
      %368 = vmatprep.subr.mxu0 %v257
      %369 = vmatpush1.msra.mxu0 %v256
      %370 = vmatprep.subr.mxu0 %v300
      %371 = vmatpush1.msra.mxu0 %v301
      %372 = vmatprep.subr.mxu0 %v290
      %373 = vmatpush1.msra.mxu0 %v291
      %374 = vmatprep.subr.mxu0 %v280
      %375 = vmatpush1.msra.mxu0 %v281
      %376 = vmatprep.subr.mxu0 %v270
      %377 = vmatpush1.msra.mxu0 %v271
      %378 = vmatprep.subr.mxu0 0.0
      %379 = vmatpush2.msra.mxu0 0.0
      %380 = vmatprep.subr.mxu0 0.0
      %381 = vmatpush2.msra.mxu0 0.0
      %382 = vmatprep.subr.mxu0 0.0
      %383 = vmatpush2.msra.mxu0 0.0
      %384 = vmatprep.subr.mxu0 0.0
      %385 = vmatpush2.msra.mxu0 0.0
      %386 = vmatprep.subr.mxu0 0.0
      %387 = vmatpush2.msra.mxu0 0.0
      %388 = vmatprep.subr.mxu0 0.0
      %389 = vmatpush2.msra.mxu0 0.0
      %390 = vmatprep.subr.mxu0 0.0
      %391 = vmatpush2.msra.mxu0 0.0
      %392 = vmatprep.subr.mxu0 0.0
      %393 = vmatpush2.msra.mxu0 0.0
      %394 = vmatprep.subr.mxu0 0.0
      %395 = vmatpush2.msra.mxu0 0.0
      %396 = vmatprep.subr.mxu0 0.0
      %397 = vmatpush2.msra.mxu0 0.0
      %398 = vmatprep.subr.mxu0 0.0
      %399 = vmatpush2.msra.mxu0 0.0
      %400 = vmatprep.subr.mxu0 0.0
      %401 = vmatpush2.msra.mxu0 0.0
      %402 = vmatprep.subr.mxu0 0.0
      %403 = vmatpush2.msra.mxu0 0.0
      %404 = vmatprep.subr.mxu0 0.0
      %405 = vmatpush2.msra.mxu0 0.0
      %406 = vmatprep.subr.mxu0 0.0
      %407 = vmatpush2.msra.mxu0 0.0
      %408 = vmatprep.subr.mxu0 0.0
      %409 = vmatpush2.msra.mxu0 0.0
      %410 = vmatprep.mubr.f32.mxu0 0.0
      %411 = vmatmul.mubr.f32.gmra.mxu0 %v344
      %v412 = vpop.f32.mrf.mxu0
      %v413 = vadd.f32 0.0, %v412
      %v414 = vpop.f32.mrf.mxu0
      %v415 = vadd.f32 0.0, %v414
      %416 = vdwg.mxu0
      %417 = vmatprep.subr.mxu0 0.0
      %418 = vmatpush1.msra.mxu0 0.0
      %419 = vmatprep.subr.mxu0 0.0
      %420 = vmatpush1.msra.mxu0 0.0
      %421 = vmatprep.subr.mxu0 0.0
      %422 = vmatpush1.msra.mxu0 0.0
      %423 = vmatprep.subr.mxu0 0.0
      %424 = vmatpush1.msra.mxu0 0.0
      %425 = vmatprep.subr.mxu0 0.0
      %426 = vmatpush1.msra.mxu0 0.0
      %427 = vmatprep.subr.mxu0 0.0
      %428 = vmatpush1.msra.mxu0 0.0
      %429 = vmatprep.subr.mxu0 0.0
      %430 = vmatpush1.msra.mxu0 0.0
      %431 = vmatprep.subr.mxu0 0.0
      %432 = vmatpush1.msra.mxu0 %v341
      %433 = vmatprep.subr.mxu0 0.0
      %434 = vmatpush1.msra.mxu0 %v331
      %435 = vmatprep.subr.mxu0 0.0
      %436 = vmatpush1.msra.mxu0 %v321
      %437 = vmatprep.subr.mxu0 0.0
      %438 = vmatpush1.msra.mxu0 %v311
      %439 = vmatprep.subr.mxu0 0.0
      %440 = vmatpush1.msra.mxu0 %v258
      %441 = vmatprep.subr.mxu0 0.0
      %442 = vmatpush1.msra.mxu0 %v299
      %443 = vmatprep.subr.mxu0 0.0
      %444 = vmatpush1.msra.mxu0 %v289
      %445 = vmatprep.subr.mxu0 0.0
      %446 = vmatpush1.msra.mxu0 %v279
      %447 = vmatprep.subr.mxu0 0.0
      %448 = vmatpush1.msra.mxu0 %v269
      %449 = vmatprep.subr.mxu0 0.0
      %450 = vmatpush2.msra.mxu0 0.0
      %451 = vmatprep.subr.mxu0 0.0
      %452 = vmatpush2.msra.mxu0 0.0
      %453 = vmatprep.subr.mxu0 0.0
      %454 = vmatpush2.msra.mxu0 0.0
      %455 = vmatprep.subr.mxu0 0.0
      %456 = vmatpush2.msra.mxu0 0.0
      %457 = vmatprep.subr.mxu0 0.0
      %458 = vmatpush2.msra.mxu0 0.0
      %459 = vmatprep.subr.mxu0 0.0
      %460 = vmatpush2.msra.mxu0 0.0
      %461 = vmatprep.subr.mxu0 0.0
      %462 = vmatpush2.msra.mxu0 0.0
      %463 = vmatprep.subr.mxu0 0.0
      %464 = vmatpush2.msra.mxu0 0.0
      %465 = vmatprep.subr.mxu0 0.0
      %466 = vmatpush2.msra.mxu0 0.0
      %467 = vmatprep.subr.mxu0 0.0
      %468 = vmatpush2.msra.mxu0 0.0
      %469 = vmatprep.subr.mxu0 0.0
      %470 = vmatpush2.msra.mxu0 0.0
      %471 = vmatprep.subr.mxu0 0.0
      %472 = vmatpush2.msra.mxu0 0.0
      %473 = vmatprep.subr.mxu0 0.0
      %474 = vmatpush2.msra.mxu0 0.0
      %475 = vmatprep.subr.mxu0 0.0
      %476 = vmatpush2.msra.mxu0 0.0
      %477 = vmatprep.subr.mxu0 0.0
      %478 = vmatpush2.msra.mxu0 0.0
      %479 = vmatprep.subr.mxu0 0.0
      %480 = vmatpush2.msra.mxu0 0.0
      %481 = vmatprep.mubr.f32.mxu0 0.0
      %482 = vmatmul.mubr.f32.gmra.mxu0 %v344
      %v483 = vpop.f32.mrf.mxu0
      %v484 = vadd.f32 0.0, %v483
      %v485 = vpop.f32.mrf.mxu0
      %486 = vdwg.mxu0
      %487 = vst [vmem:[%s248] sm:$0xff] %v413
      %488 = vst [vmem:[%s248 + $0x8] sm:$0xff] %v415
      %489 = vst [vmem:[%s248 + $0x10] sm:$0xff] %v484
      %v490 = vld [vmem:[%s2] sm:$0x7]
      %v492 = vlaneseq
      %v493 = vshrl.u32 %v492, 7
      %v494 = vsub.s32 0, %v493
      %v495 = vrot.slane %v490, %v494
      %v496 = vlaneseq
      %v497 = vshrl.u32 %v496, 7
      %v498 = vsub.s32 1, %v497
      %v499 = vrot.slane %v490, %v498
      %v500 = vlaneseq
      %v501 = vshrl.u32 %v500, 7
      %v502 = vsub.s32 2, %v501
      %v503 = vrot.slane %v490, %v502
      %v507 = vmul.f32 %v413, %v495
      %v508 = vmul.f32 %v415, %v499
      %v509 = vmul.f32 %v484, %v503
      %v510 = vadd.f32 %v507, %v508
      %v511 = vadd.f32 %v510, %v509
      %512 = vadd.xlane.f32.xlu0 %v511
      %v513 = vpop.xlane.xlu0 %512
      %v514 = vmul.f32 %v507, %v413
      %v515 = vmul.f32 %v508, %v415
      %v516 = vmul.f32 %v509, %v484
      %v517 = vadd.f32 %v514, %v515
      %v518 = vadd.f32 %v517, %v516
      %519 = vadd.xlane.f32.xlu0 %v518
      %v520 = vpop.xlane.xlu0 %519
      %vm521 = vcmask 7168
      %v522 = vsel %vm521, %v513, %v520
      %vm523 = vcmask 15360
      %524 = vst.msk [vmem:[%s255] sm:$0xff] %vm523, %v522
      %p525 = scmp.lt.s32.totalorder %s20, 1
      %s526 = scalar_select %p525, %s20, 1
      %p527 = scmp.lt.s32.totalorder %s21, 0
      %s528 = scalar_select %p527, %s21, 0
      %s529 = smul.addr %s528, 3
      %s530 = smul.addr %s526, 3
      %s531 = sadd.s32 %s529, %s530
      %s532 = smul.addr %s531, 8
      %s533 = scalar_lea.vmem %s3, %s532
      %p534 = scmp.lt.s32.totalorder %s20, 1
      %s535 = scalar_select %p534, %s20, 1
      %p536 = scmp.lt.s32.totalorder %s21, 0
      %s537 = scalar_select %p536, %s21, 0
      %s538 = sadd.s32 %s537, %s535
      %s539 = smul.addr %s538, 8
      %s540 = scalar_lea.vmem %s4, %s539
      // Predicated region
      $region33: #{double_conv_block.3} parent=31 // pred_check
        %p541 = pneg %p121
      $region34: #{double_conv_block.3} parent=31 // pred_check_branch
        %543 = sbr.rel (%p541) target = $region36
      $region35: #{double_conv_block.3} parent=31 // pred_region
        _
      $region36: #{double_conv_block.3} parent=31 // pred_fallthru
        _
      // Predicated region
      $region37: #{double_conv_block.3} parent=31 // pred_check
        %p544 = pneg %p149
      $region38: #{double_conv_block.3} parent=31 // pred_check_branch
        %546 = sbr.rel (%p544) target = $region40
      $region39: #{double_conv_block.3} parent=31 // pred_region
        _
      $region40: #{double_conv_block.3} parent=31 // pred_fallthru
        _
    $region32: #{double_conv_block.3} parent=5 // pred_fallthru
      _
    %p547 = scmp.le.s32.totalorder 2, %s11
    // Predicated region
    $region41: #{double_conv_block.3} parent=5 // pred_check
      %p548 = pneg %p547
    $region42: #{double_conv_block.3} parent=5 // pred_check_branch
      %550 = sbr.rel (%p548) target = $region44
    $region43: #{double_conv_block.3} parent=5 // pred_region
      %s551 = ssub.s32 %s11, 2
      // Predicated region
      $region45: #{double_conv_block.3} parent=43 // pred_check
        %p552 = pneg %p127
      $region46: #{double_conv_block.3} parent=43 // pred_check_branch
        %554 = sbr.rel (%p552) target = $region48
      $region47: #{double_conv_block.3} parent=43 // pred_region
        %p555 = scmp.lt.s32.totalorder %s22, 1
        %s556 = scalar_select %p555, %s22, 1
        %p557 = scmp.lt.s32.totalorder %s23, 0
        %s558 = scalar_select %p557, %s23, 0
        %s559 = smul.addr %s558, 3
        %s560 = smul.addr %s556, 3
        %s561 = sadd.s32 %s559, %s560
        %s562 = smul.addr %s561, 8
        %s563 = scalar_lea.vmem %s3, %s562
      $region48: #{double_conv_block.3} parent=43 // pred_fallthru
        _
      // Predicated region
      $region49: #{double_conv_block.3} parent=43 // pred_check
        %p564 = pneg %p155
      $region50: #{double_conv_block.3} parent=43 // pred_check_branch
        %566 = sbr.rel (%p564) target = $region52
      $region51: #{double_conv_block.3} parent=43 // pred_region
        %p567 = scmp.lt.s32.totalorder %s22, 1
        %s568 = scalar_select %p567, %s22, 1
        %p569 = scmp.lt.s32.totalorder %s23, 0
        %s570 = scalar_select %p569, %s23, 0
        %s571 = sadd.s32 %s570, %s568
        %s572 = smul.addr %s571, 8
        %s573 = scalar_lea.vmem %s4, %s572
      $region52: #{double_conv_block.3} parent=43 // pred_fallthru
        _
    $region44: #{double_conv_block.3} parent=5 // pred_fallthru
      _
  $region6: #{double_conv_block.3} parent=0 // loop_footer
    %s15 = sadd.s32 1, %s11
  $region7: #{double_conv_block.3} parent=0 // loop_footer_branch
    %10 = sbr.rel target = $region3
  $region8: #{double_conv_block.3} parent=0 // loop_exit
    _

</llo_original>
